<compile_context>
chip_gen: v7x
topology: tpu7x:2x2x1
jax: 0.10.0
libtpu: 0.0.40
codegen_flags: <defaults>
</compile_context>

<pallas_src>
import functools

import jax
import jax.numpy as jnp
from jax.experimental import pallas as pl
from jax.experimental.pallas import tpu as pltpu

_LANE = 128


def _round_up(x, m):
    return (x + m - 1) // m * m


def _fold_bn(gamma, beta, mean, var, eps=1e-5):
    scale = gamma / jnp.sqrt(var + eps)
    shift = beta - mean * scale
    return scale, shift


# ----------------------------------------------------------------------------
# Fused BasicBlock kernel (one batch tile per grid step, everything in VMEM).
# ----------------------------------------------------------------------------
def _basic_block_kernel(x_ref, w1_ref, b1_ref, w2_ref, b2_ref, *rest,
                        stride, hm, wm, has_shortcut_conv):
    if has_shortcut_conv:
        ws_ref, bs_ref, o_ref = rest
    else:
        (o_ref,) = rest

    s = stride
    xv = x_ref[...]                                   # (bn*s*s, Hh, Wh, Cin)
    nb = xv.shape[0] // (s * s)
    cin = xv.shape[-1]
    cp = w1_ref.shape[1]                              # lane-padded channels
    m = nb * hm * wm
    xv = xv.reshape(nb, s * s, xv.shape[1], xv.shape[2], cin)

    def im2col3(v, st, hh, ww):
        # v: (nb, st*st, Hph, Wph, C) phase-split padded input.
        # Returns the (nb*hh*ww, 9*C) im2col patch of a 3x3 / stride-st conv.
        c = v.shape[-1]
        cols = []
        for kh in range(3):
            for kw in range(3):
                ph = (kh % st) * st + (kw % st)
                oh, ow = kh // st, kw // st
                t = v[:, ph, oh:oh + hh, ow:ow + ww, :]   # contiguous slice
                cols.append(t.reshape(nb * hh * ww, c))
        return jnp.concatenate(cols, axis=-1)

    # ---- conv1 (3x3, stride s) + bn1 (scale folded into w1) + ReLU ---------
    patch1 = im2col3(xv, s, hm, wm).astype(jnp.bfloat16)       # (M, 9*Cin)
    mid = jnp.dot(patch1, w1_ref[...], preferred_element_type=jnp.float32)
    mid = jnp.maximum(mid + b1_ref[...], 0.0)                  # (M, Cp) f32

    # ---- conv2 (3x3, stride 1) + bn2: re-pad intermediate in VMEM ----------
    mid_p = jnp.pad(mid.reshape(nb, hm, wm, cp),
                    ((0, 0), (1, 1), (1, 1), (0, 0)))
    mid_p = mid_p.reshape(nb, 1, hm + 2, wm + 2, cp)
    patch2 = im2col3(mid_p, 1, hm, wm).astype(jnp.bfloat16)    # (M, 9*Cp)
    out = jnp.dot(patch2, w2_ref[...], preferred_element_type=jnp.float32)
    out = out + b2_ref[...]

    # ---- shortcut (1x1 conv + bn, stride s) or identity, + add + ReLU ------
    ph0 = (1 % s) * s + (1 % s)
    o0 = 1 // s
    res_in = xv[:, ph0, o0:o0 + hm, o0:o0 + wm, :].reshape(m, cin)
    if has_shortcut_conv:
        res = jnp.dot(res_in.astype(jnp.bfloat16), ws_ref[...],
                      preferred_element_type=jnp.float32) + bs_ref[...]
    else:
        # identity shortcut (stride == 1, Cin == planes): exact f32 residual.
        res = jnp.pad(res_in, ((0, 0), (0, cp - cin)))

    out = jnp.maximum(out + res, 0.0)
    o_ref[...] = out.reshape(nb, hm, wm, cp)


def _pick_block_n(n_batch, per_sample_bytes, budget_bytes):
    best = 1
    for cand in range(1, n_batch + 1):
        if n_batch % cand == 0 and cand * per_sample_bytes <= budget_bytes:
            best = cand
    return best


# ----------------------------------------------------------------------------
# Wrapper: NCHW in, NCHW out; one pallas_call for the whole BasicBlock.
# ----------------------------------------------------------------------------
def basic_block_forward(x_nchw, params, *, block_n=None):
    N, Cin, H, W = x_nchw.shape
    stride = int(params["stride"])
    w1, w2 = params["w1"], params["w2"]
    planes = w1.shape[-1]
    Cp = _round_up(planes, _LANE)

    s1, b1 = _fold_bn(*params["bn1"])
    s2, b2 = _fold_bn(*params["bn2"])

    def prep_w(w, scale, shift, cin_pad=0):
        # Fold BN scale into the conv weight, pad Cout (and optionally Cin) to
        # the lane width, reshape HWIO -> (KH*KW*Cin, Cout), pre-cast to bf16.
        wf = w * scale[None, None, None, :]
        wf = jnp.pad(wf, ((0, 0), (0, 0), (0, cin_pad), (0, Cp - planes)))
        kh, kw, ci, _ = wf.shape
        w2d = wf.reshape(kh * kw * ci, Cp).astype(jnp.bfloat16)
        sh = jnp.pad(shift, (0, Cp - planes)).reshape(1, Cp).astype(jnp.float32)
        return w2d, sh

    w1_2d, b1p = prep_w(w1, s1, b1)
    w2_2d, b2p = prep_w(w2, s2, b2, cin_pad=Cp - planes)

    has_sc = params["shortcut"] is not None
    if has_sc:
        ws, bn_s = params["shortcut"]
        ss, bs = _fold_bn(*bn_s)
        ws_2d, bsp = prep_w(ws, ss, bs)

    # NCHW -> NHWC (f32), pad spatially by 1, split into stride phases so the
    # kernel never needs strided slices.
    x = jnp.transpose(x_nchw, (0, 2, 3, 1)).astype(jnp.float32)
    Hm = (H - 1) // stride + 1
    Wm = (W - 1) // stride + 1
    Hp, Wp = H + 2, W + 2
    eh, ew = (-Hp) % stride, (-Wp) % stride
    xp = jnp.pad(x, ((0, 0), (1, 1 + eh), (1, 1 + ew), (0, 0)))
    Hp, Wp = Hp + eh, Wp + ew
    Hh, Wh = Hp // stride, Wp // stride
    xph = xp.reshape(N, Hh, stride, Wh, stride, Cin)
    xph = jnp.transpose(xph, (0, 2, 4, 1, 3, 5))
    xph = xph.reshape(N * stride * stride, Hh, Wh, Cin)

    if block_n is None:
        # Rough per-sample VMEM estimate: double-buffered in/out blocks plus
        # in-kernel im2col patches and intermediates.  Stay well under the
        # smallest (v5e, 16 MiB) default scoped-VMEM budget.
        per_sample = (2 * stride * stride * Hh * Wh * Cin * 4
                      + 2 * Hm * Wm * Cp * 4
                      + Hm * Wm * (2 * 9 * Cin + 2 * 9 * Cp + 4 * 3 * Cp))
        w_bytes = 4 * (w1_2d.size + w2_2d.size)
        budget = max(2 << 20, (12 << 20) - w_bytes)
        block_n = _pick_block_n(N, per_sample, budget)

    kernel = functools.partial(
        _basic_block_kernel, stride=stride, hm=Hm, wm=Wm,
        has_shortcut_conv=has_sc)

    in_specs = [
        pl.BlockSpec((block_n * stride * stride, Hh, Wh, Cin),
                     lambda n: (n, 0, 0, 0)),
        pl.BlockSpec((9 * Cin, Cp), lambda n: (0, 0)),
        pl.BlockSpec((1, Cp), lambda n: (0, 0)),
        pl.BlockSpec((9 * Cp, Cp), lambda n: (0, 0)),
        pl.BlockSpec((1, Cp), lambda n: (0, 0)),
    ]
    args = [xph, w1_2d, b1p, w2_2d, b2p]
    if has_sc:
        in_specs += [pl.BlockSpec((Cin, Cp), lambda n: (0, 0)),
                     pl.BlockSpec((1, Cp), lambda n: (0, 0))]
        args += [ws_2d, bsp]

    out = pl.pallas_call(
        kernel,
        out_shape=jax.ShapeDtypeStruct((N, Hm, Wm, Cp), jnp.float32),
        grid=(N // block_n,),
        in_specs=in_specs,
        out_specs=pl.BlockSpec((block_n, Hm, Wm, Cp),
                               lambda n: (n, 0, 0, 0)),
        compiler_params=pltpu.CompilerParams(
            dimension_semantics=("parallel",)),
    )(*args)

    out = out[..., :planes]                     # drop lane padding
    return jnp.transpose(out, (0, 3, 1, 2))     # NHWC -> NCHW


# ----------------------------------------------------------------------------
# Pure-JAX reference (true f32, for correctness check)
# ----------------------------------------------------------------------------
def _conv_ref(x, w, stride, padding):
    return jax.lax.conv_general_dilated(
        x, w, (stride, stride), [(padding, padding)] * 2,
        dimension_numbers=("NHWC", "HWIO", "NHWC"),
        precision=jax.lax.Precision.HIGHEST)


def basic_block_ref(x_nchw, params):
    x = jnp.transpose(x_nchw, (0, 2, 3, 1)).astype(jnp.float32)
    s1, b1 = _fold_bn(*params["bn1"])
    s2, b2 = _fold_bn(*params["bn2"])
    out = _conv_ref(x, params["w1"], params["stride"], 1) * s1 + b1
    out = jnp.maximum(out, 0.0)
    out = _conv_ref(out, params["w2"], 1, 1) * s2 + b2
    if params["shortcut"] is not None:
        ws, bn_s = params["shortcut"]
        ss, bs = _fold_bn(*bn_s)
        sc = _conv_ref(x, ws, params["stride"], 0) * ss + bs
    else:
        sc = x
    out = jnp.maximum(out + sc, 0.0)
    return jnp.transpose(out, (0, 3, 1, 2))


# ----------------------------------------------------------------------------
# Deterministic parameter construction (mirrors BasicBlock.__init__ shapes)
# ----------------------------------------------------------------------------
def make_params(key, in_planes, planes, stride):
    ks = jax.random.split(key, 12)

    def bn_params(k0, k1, k2, k3, c):
        gamma = 0.5 + jax.random.uniform(k0, (c,), jnp.float32)
        beta = 0.1 * jax.random.normal(k1, (c,), jnp.float32)
        mean = 0.1 * jax.random.normal(k2, (c,), jnp.float32)
        var = 0.5 + jax.random.uniform(k3, (c,), jnp.float32)
        return gamma, beta, mean, var

    params = {
        "stride": stride,
        "w1": 0.1 * jax.random.normal(ks[0], (3, 3, in_planes, planes),
                                      jnp.float32),
        "bn1": bn_params(ks[1], ks[2], ks[3], ks[4], planes),
        "w2": 0.1 * jax.random.normal(ks[5], (3, 3, planes, planes),
                                      jnp.float32),
        "bn2": bn_params(ks[6], ks[7], ks[8], ks[9], planes),
        "shortcut": None,
    }
    if stride != 1 or in_planes != planes:
        ws = 0.1 * jax.random.normal(ks[10], (1, 1, in_planes, planes),
                                     jnp.float32)
        bn_s = bn_params(*jax.random.split(ks[11], 4), planes)
        params["shortcut"] = (ws, bn_s)
    return params


if __name__ == "__main__":
    key = jax.random.PRNGKey(0)
    k_x1, k_p1, k_x2, k_p2 = jax.random.split(key, 4)

    # bf16 MXU inputs with f32 accumulation -> compare against a true-f32
    # reference with a correspondingly loose tolerance.
    ATOL = RTOL = 5e-2

    # Config 1: stride-2 downsampling block (exercises the 1x1-conv+BN
    # shortcut branch).  batch=2, in_planes=4, planes=8, 16x16 spatial.
    N, in_planes, planes, H, W, stride = 2, 4, 8, 16, 16, 2
    x = jax.random.normal(k_x1, (N, in_planes, H, W), jnp.float32)  # NCHW
    params = make_params(k_p1, in_planes, planes, stride)
    out = jax.block_until_ready(basic_block_forward(x, params))
    ref = jax.block_until_ready(basic_block_ref(x, params))
    assert out.shape == (N, planes, H // stride, W // stride), out.shape
    assert jnp.allclose(out, ref, atol=ATOL, rtol=RTOL), (
        float(jnp.max(jnp.abs(out - ref))))

    # Config 2: stride-1 identity-shortcut block.
    N2, planes2, H2, W2 = 2, 8, 16, 16
    x2 = jax.random.normal(k_x2, (N2, planes2, H2, W2), jnp.float32)
    params2 = make_params(k_p2, planes2, planes2, 1)
    out2 = jax.block_until_ready(basic_block_forward(x2, params2))
    ref2 = jax.block_until_ready(basic_block_ref(x2, params2))
    assert out2.shape == (N2, planes2, H2, W2), out2.shape
    assert jnp.allclose(out2, ref2, atol=ATOL, rtol=RTOL), (
        float(jnp.max(jnp.abs(out2 - ref2))))

    print("KERNEL_OK")
</pallas_src>

<mosaic_0001>
module attributes {stable_mosaic.version = 11 : i64} {
  func.func @_basic_block_kernel(%arg0: i32, %arg1: memref<8x9x9x4xf32, #tpu.memory_space<vmem>>, %arg2: memref<36x128xbf16, #tpu.memory_space<vmem>>, %arg3: memref<1x128xf32, #tpu.memory_space<vmem>>, %arg4: memref<1152x128xbf16, #tpu.memory_space<vmem>>, %arg5: memref<1x128xf32, #tpu.memory_space<vmem>>, %arg6: memref<4x128xbf16, #tpu.memory_space<vmem>>, %arg7: memref<1x128xf32, #tpu.memory_space<vmem>>, %arg8: memref<2x8x8x128xf32, #tpu.memory_space<vmem>>) attributes {dimension_semantics = [#tpu.dimension_semantics<parallel>], iteration_bounds = array<i64: 1>, scalar_prefetch = 0 : i64, scratch_operands = 0 : i64, tpu.core_type = #tpu.core_type<tc>, window_params = [{transform_indices = @transform_0, window_bounds = array<i64: 8, 9, 9, 4>}, {pipeline_mode = #tpu.pipeline_mode<synchronous>, transform_indices = @transform_1, window_bounds = array<i64: 36, 128>}, {pipeline_mode = #tpu.pipeline_mode<synchronous>, transform_indices = @transform_2, window_bounds = array<i64: 1, 128>}, {pipeline_mode = #tpu.pipeline_mode<synchronous>, transform_indices = @transform_3, window_bounds = array<i64: 1152, 128>}, {pipeline_mode = #tpu.pipeline_mode<synchronous>, transform_indices = @transform_4, window_bounds = array<i64: 1, 128>}, {pipeline_mode = #tpu.pipeline_mode<synchronous>, transform_indices = @transform_5, window_bounds = array<i64: 4, 128>}, {pipeline_mode = #tpu.pipeline_mode<synchronous>, transform_indices = @transform_6, window_bounds = array<i64: 1, 128>}, {transform_indices = @transform_7, window_bounds = array<i64: 2, 8, 8, 128>}]} {
    %c0 = arith.constant 0 : index
    %c0_0 = arith.constant 0 : index
    %c0_1 = arith.constant 0 : index
    %c0_2 = arith.constant 0 : index
    %0 = vector.load %arg1[%c0, %c0_0, %c0_1, %c0_2] : memref<8x9x9x4xf32, #tpu.memory_space<vmem>>, vector<8x9x9x4xf32>
    %1 = vector.shape_cast %0 : vector<8x9x9x4xf32> to vector<2x4x9x9x4xf32>
    %2 = vector.extract_strided_slice %1 {offsets = [0, 0, 0, 0, 0], sizes = [2, 1, 8, 8, 4], strides = [1, 1, 1, 1, 1]} : vector<2x4x9x9x4xf32> to vector<2x1x8x8x4xf32>
    %3 = vector.shape_cast %2 : vector<2x1x8x8x4xf32> to vector<2x8x8x4xf32>
    %4 = vector.shape_cast %3 : vector<2x8x8x4xf32> to vector<128x4xf32>
    %5 = vector.extract_strided_slice %1 {offsets = [0, 1, 0, 0, 0], sizes = [2, 1, 8, 8, 4], strides = [1, 1, 1, 1, 1]} : vector<2x4x9x9x4xf32> to vector<2x1x8x8x4xf32>
    %6 = vector.shape_cast %5 : vector<2x1x8x8x4xf32> to vector<2x8x8x4xf32>
    %7 = vector.shape_cast %6 : vector<2x8x8x4xf32> to vector<128x4xf32>
    %8 = vector.extract_strided_slice %1 {offsets = [0, 0, 0, 1, 0], sizes = [2, 1, 8, 8, 4], strides = [1, 1, 1, 1, 1]} : vector<2x4x9x9x4xf32> to vector<2x1x8x8x4xf32>
    %9 = vector.shape_cast %8 : vector<2x1x8x8x4xf32> to vector<2x8x8x4xf32>
    %10 = vector.shape_cast %9 : vector<2x8x8x4xf32> to vector<128x4xf32>
    %11 = vector.extract_strided_slice %1 {offsets = [0, 2, 0, 0, 0], sizes = [2, 1, 8, 8, 4], strides = [1, 1, 1, 1, 1]} : vector<2x4x9x9x4xf32> to vector<2x1x8x8x4xf32>
    %12 = vector.shape_cast %11 : vector<2x1x8x8x4xf32> to vector<2x8x8x4xf32>
    %13 = vector.shape_cast %12 : vector<2x8x8x4xf32> to vector<128x4xf32>
    %14 = vector.extract_strided_slice %1 {offsets = [0, 3, 0, 0, 0], sizes = [2, 1, 8, 8, 4], strides = [1, 1, 1, 1, 1]} : vector<2x4x9x9x4xf32> to vector<2x1x8x8x4xf32>
    %15 = vector.shape_cast %14 : vector<2x1x8x8x4xf32> to vector<2x8x8x4xf32>
    %16 = vector.shape_cast %15 : vector<2x8x8x4xf32> to vector<128x4xf32>
    %17 = vector.extract_strided_slice %1 {offsets = [0, 2, 0, 1, 0], sizes = [2, 1, 8, 8, 4], strides = [1, 1, 1, 1, 1]} : vector<2x4x9x9x4xf32> to vector<2x1x8x8x4xf32>
    %18 = vector.shape_cast %17 : vector<2x1x8x8x4xf32> to vector<2x8x8x4xf32>
    %19 = vector.shape_cast %18 : vector<2x8x8x4xf32> to vector<128x4xf32>
    %20 = vector.extract_strided_slice %1 {offsets = [0, 0, 1, 0, 0], sizes = [2, 1, 8, 8, 4], strides = [1, 1, 1, 1, 1]} : vector<2x4x9x9x4xf32> to vector<2x1x8x8x4xf32>
    %21 = vector.shape_cast %20 : vector<2x1x8x8x4xf32> to vector<2x8x8x4xf32>
    %22 = vector.shape_cast %21 : vector<2x8x8x4xf32> to vector<128x4xf32>
    %23 = vector.extract_strided_slice %1 {offsets = [0, 1, 1, 0, 0], sizes = [2, 1, 8, 8, 4], strides = [1, 1, 1, 1, 1]} : vector<2x4x9x9x4xf32> to vector<2x1x8x8x4xf32>
    %24 = vector.shape_cast %23 : vector<2x1x8x8x4xf32> to vector<2x8x8x4xf32>
    %25 = vector.shape_cast %24 : vector<2x8x8x4xf32> to vector<128x4xf32>
    %26 = vector.extract_strided_slice %1 {offsets = [0, 0, 1, 1, 0], sizes = [2, 1, 8, 8, 4], strides = [1, 1, 1, 1, 1]} : vector<2x4x9x9x4xf32> to vector<2x1x8x8x4xf32>
    %27 = vector.shape_cast %26 : vector<2x1x8x8x4xf32> to vector<2x8x8x4xf32>
    %28 = vector.shape_cast %27 : vector<2x8x8x4xf32> to vector<128x4xf32>
    %29 = tpu.concatenate %4, %7, %10, %13, %16, %19, %22, %25, %28 in 1 : vector<128x4xf32>, vector<128x4xf32>, vector<128x4xf32>, vector<128x4xf32>, vector<128x4xf32>, vector<128x4xf32>, vector<128x4xf32>, vector<128x4xf32>, vector<128x4xf32> -> vector<128x36xf32>
    %30 = arith.truncf %29 : vector<128x36xf32> to vector<128x36xbf16>
    %c0_3 = arith.constant 0 : index
    %c0_4 = arith.constant 0 : index
    %31 = vector.load %arg2[%c0_3, %c0_4] : memref<36x128xbf16, #tpu.memory_space<vmem>>, vector<36x128xbf16>
    %cst = arith.constant dense<0.000000e+00> : vector<128x128xf32>
    %32 = tpu.matmul %30, %31, %cst {dimension_numbers = #tpu.dot_dimension_numbers<[1], [0], [0], [1], [0, 0, 1, 1], [], []>} : vector<128x36xbf16>, vector<36x128xbf16>, vector<128x128xf32> -> vector<128x128xf32>
    %c0_5 = arith.constant 0 : index
    %c0_6 = arith.constant 0 : index
    %33 = vector.load %arg3[%c0_5, %c0_6] : memref<1x128xf32, #tpu.memory_space<vmem>>, vector<1x128xf32>
    %34 = vector.broadcast %33 : vector<1x128xf32> to vector<128x128xf32>
    %35 = arith.addf %32, %34 : vector<128x128xf32>
    %cst_7 = arith.constant 0.000000e+00 : f32
    %36 = vector.broadcast %cst_7 : f32 to vector<128x128xf32>
    %37 = arith.maximumf %35, %36 : vector<128x128xf32>
    %38 = vector.shape_cast %37 : vector<128x128xf32> to vector<2x8x8x128xf32>
    %c0_i32 = arith.constant 0 : i32
    %39 = arith.sitofp %c0_i32 : i32 to f32
    %40 = vector.broadcast %39 : f32 to vector<2x1x8x128xf32>
    %41 = tpu.concatenate %40, %38 in 1 : vector<2x1x8x128xf32>, vector<2x8x8x128xf32> -> vector<2x9x8x128xf32>
    %42 = vector.broadcast %39 : f32 to vector<2x1x8x128xf32>
    %43 = tpu.concatenate %41, %42 in 1 : vector<2x9x8x128xf32>, vector<2x1x8x128xf32> -> vector<2x10x8x128xf32>
    %44 = vector.broadcast %39 : f32 to vector<2x10x1x128xf32>
    %45 = tpu.concatenate %44, %43 in 2 : vector<2x10x1x128xf32>, vector<2x10x8x128xf32> -> vector<2x10x9x128xf32>
    %46 = vector.broadcast %39 : f32 to vector<2x10x1x128xf32>
    %47 = tpu.concatenate %45, %46 in 2 : vector<2x10x9x128xf32>, vector<2x10x1x128xf32> -> vector<2x10x10x128xf32>
    %48 = vector.shape_cast %47 : vector<2x10x10x128xf32> to vector<2x1x10x10x128xf32>
    %49 = vector.extract_strided_slice %48 {offsets = [0, 0, 0, 0, 0], sizes = [2, 1, 8, 8, 128], strides = [1, 1, 1, 1, 1]} : vector<2x1x10x10x128xf32> to vector<2x1x8x8x128xf32>
    %50 = vector.shape_cast %49 : vector<2x1x8x8x128xf32> to vector<2x8x8x128xf32>
    %51 = vector.shape_cast %50 : vector<2x8x8x128xf32> to vector<128x128xf32>
    %52 = vector.extract_strided_slice %48 {offsets = [0, 0, 0, 1, 0], sizes = [2, 1, 8, 8, 128], strides = [1, 1, 1, 1, 1]} : vector<2x1x10x10x128xf32> to vector<2x1x8x8x128xf32>
    %53 = vector.shape_cast %52 : vector<2x1x8x8x128xf32> to vector<2x8x8x128xf32>
    %54 = vector.shape_cast %53 : vector<2x8x8x128xf32> to vector<128x128xf32>
    %55 = vector.extract_strided_slice %48 {offsets = [0, 0, 0, 2, 0], sizes = [2, 1, 8, 8, 128], strides = [1, 1, 1, 1, 1]} : vector<2x1x10x10x128xf32> to vector<2x1x8x8x128xf32>
    %56 = vector.shape_cast %55 : vector<2x1x8x8x128xf32> to vector<2x8x8x128xf32>
    %57 = vector.shape_cast %56 : vector<2x8x8x128xf32> to vector<128x128xf32>
    %58 = vector.extract_strided_slice %48 {offsets = [0, 0, 1, 0, 0], sizes = [2, 1, 8, 8, 128], strides = [1, 1, 1, 1, 1]} : vector<2x1x10x10x128xf32> to vector<2x1x8x8x128xf32>
    %59 = vector.shape_cast %58 : vector<2x1x8x8x128xf32> to vector<2x8x8x128xf32>
    %60 = vector.shape_cast %59 : vector<2x8x8x128xf32> to vector<128x128xf32>
    %61 = vector.extract_strided_slice %48 {offsets = [0, 0, 1, 1, 0], sizes = [2, 1, 8, 8, 128], strides = [1, 1, 1, 1, 1]} : vector<2x1x10x10x128xf32> to vector<2x1x8x8x128xf32>
    %62 = vector.shape_cast %61 : vector<2x1x8x8x128xf32> to vector<2x8x8x128xf32>
    %63 = vector.shape_cast %62 : vector<2x8x8x128xf32> to vector<128x128xf32>
    %64 = vector.extract_strided_slice %48 {offsets = [0, 0, 1, 2, 0], sizes = [2, 1, 8, 8, 128], strides = [1, 1, 1, 1, 1]} : vector<2x1x10x10x128xf32> to vector<2x1x8x8x128xf32>
    %65 = vector.shape_cast %64 : vector<2x1x8x8x128xf32> to vector<2x8x8x128xf32>
    %66 = vector.shape_cast %65 : vector<2x8x8x128xf32> to vector<128x128xf32>
    %67 = vector.extract_strided_slice %48 {offsets = [0, 0, 2, 0, 0], sizes = [2, 1, 8, 8, 128], strides = [1, 1, 1, 1, 1]} : vector<2x1x10x10x128xf32> to vector<2x1x8x8x128xf32>
    %68 = vector.shape_cast %67 : vector<2x1x8x8x128xf32> to vector<2x8x8x128xf32>
    %69 = vector.shape_cast %68 : vector<2x8x8x128xf32> to vector<128x128xf32>
    %70 = vector.extract_strided_slice %48 {offsets = [0, 0, 2, 1, 0], sizes = [2, 1, 8, 8, 128], strides = [1, 1, 1, 1, 1]} : vector<2x1x10x10x128xf32> to vector<2x1x8x8x128xf32>
    %71 = vector.shape_cast %70 : vector<2x1x8x8x128xf32> to vector<2x8x8x128xf32>
    %72 = vector.shape_cast %71 : vector<2x8x8x128xf32> to vector<128x128xf32>
    %73 = vector.extract_strided_slice %48 {offsets = [0, 0, 2, 2, 0], sizes = [2, 1, 8, 8, 128], strides = [1, 1, 1, 1, 1]} : vector<2x1x10x10x128xf32> to vector<2x1x8x8x128xf32>
    %74 = vector.shape_cast %73 : vector<2x1x8x8x128xf32> to vector<2x8x8x128xf32>
    %75 = vector.shape_cast %74 : vector<2x8x8x128xf32> to vector<128x128xf32>
    %76 = tpu.concatenate %51, %54, %57, %60, %63, %66, %69, %72, %75 in 1 : vector<128x128xf32>, vector<128x128xf32>, vector<128x128xf32>, vector<128x128xf32>, vector<128x128xf32>, vector<128x128xf32>, vector<128x128xf32>, vector<128x128xf32>, vector<128x128xf32> -> vector<128x1152xf32>
    %77 = arith.truncf %76 : vector<128x1152xf32> to vector<128x1152xbf16>
    %c0_8 = arith.constant 0 : index
    %c0_9 = arith.constant 0 : index
    %78 = vector.load %arg4[%c0_8, %c0_9] : memref<1152x128xbf16, #tpu.memory_space<vmem>>, vector<1152x128xbf16>
    %cst_10 = arith.constant dense<0.000000e+00> : vector<128x128xf32>
    %79 = tpu.matmul %77, %78, %cst_10 {dimension_numbers = #tpu.dot_dimension_numbers<[1], [0], [0], [1], [0, 0, 1, 1], [], []>} : vector<128x1152xbf16>, vector<1152x128xbf16>, vector<128x128xf32> -> vector<128x128xf32>
    %c0_11 = arith.constant 0 : index
    %c0_12 = arith.constant 0 : index
    %80 = vector.load %arg5[%c0_11, %c0_12] : memref<1x128xf32, #tpu.memory_space<vmem>>, vector<1x128xf32>
    %81 = vector.broadcast %80 : vector<1x128xf32> to vector<128x128xf32>
    %82 = arith.addf %79, %81 : vector<128x128xf32>
    %83 = vector.extract_strided_slice %1 {offsets = [0, 3, 0, 0, 0], sizes = [2, 1, 8, 8, 4], strides = [1, 1, 1, 1, 1]} : vector<2x4x9x9x4xf32> to vector<2x1x8x8x4xf32>
    %84 = vector.shape_cast %83 : vector<2x1x8x8x4xf32> to vector<2x8x8x4xf32>
    %85 = vector.shape_cast %84 : vector<2x8x8x4xf32> to vector<128x4xf32>
    %86 = arith.truncf %85 : vector<128x4xf32> to vector<128x4xbf16>
    %c0_13 = arith.constant 0 : index
    %c0_14 = arith.constant 0 : index
    %87 = vector.load %arg6[%c0_13, %c0_14] : memref<4x128xbf16, #tpu.memory_space<vmem>>, vector<4x128xbf16>
    %cst_15 = arith.constant dense<0.000000e+00> : vector<128x128xf32>
    %88 = tpu.matmul %86, %87, %cst_15 {dimension_numbers = #tpu.dot_dimension_numbers<[1], [0], [0], [1], [0, 0, 1, 1], [], []>} : vector<128x4xbf16>, vector<4x128xbf16>, vector<128x128xf32> -> vector<128x128xf32>
    %c0_16 = arith.constant 0 : index
    %c0_17 = arith.constant 0 : index
    %89 = vector.load %arg7[%c0_16, %c0_17] : memref<1x128xf32, #tpu.memory_space<vmem>>, vector<1x128xf32>
    %90 = vector.broadcast %89 : vector<1x128xf32> to vector<128x128xf32>
    %91 = arith.addf %88, %90 : vector<128x128xf32>
    %92 = arith.addf %82, %91 : vector<128x128xf32>
    %cst_18 = arith.constant 0.000000e+00 : f32
    %93 = vector.broadcast %cst_18 : f32 to vector<128x128xf32>
    %94 = arith.maximumf %92, %93 : vector<128x128xf32>
    %95 = vector.shape_cast %94 : vector<128x128xf32> to vector<2x8x8x128xf32>
    %c0_19 = arith.constant 0 : index
    %c0_20 = arith.constant 0 : index
    %c0_21 = arith.constant 0 : index
    %c0_22 = arith.constant 0 : index
    %96 = vector.load %arg8[%c0_19, %c0_20, %c0_21, %c0_22] : memref<2x8x8x128xf32, #tpu.memory_space<vmem>>, vector<2x8x8x128xf32>
    tpu.vector_store %arg8[%c0_19, %c0_20, %c0_21, %c0_22], %95 {strides = array<i32>} : memref<2x8x8x128xf32, #tpu.memory_space<vmem>>, vector<2x8x8x128xf32>,
    return
  }
  func.func @transform_0(%arg0: i32) -> (i32, i32, i32, i32) {
    %c0_i32 = arith.constant 0 : i32
    %c0_i32_0 = arith.constant 0 : i32
    %c0_i32_1 = arith.constant 0 : i32
    %c0_i32_2 = arith.constant 0 : i32
    return %arg0, %c0_i32, %c0_i32_0, %c0_i32_1 : i32, i32, i32, i32
  }
  func.func @transform_1(%arg0: i32) -> (i32, i32) {
    %c0_i32 = arith.constant 0 : i32
    %c0_i32_0 = arith.constant 0 : i32
    %c0_i32_1 = arith.constant 0 : i32
    return %c0_i32, %c0_i32_0 : i32, i32
  }
  func.func @transform_2(%arg0: i32) -> (i32, i32) {
    %c0_i32 = arith.constant 0 : i32
    %c0_i32_0 = arith.constant 0 : i32
    %c0_i32_1 = arith.constant 0 : i32
    return %c0_i32, %c0_i32_0 : i32, i32
  }
  func.func @transform_3(%arg0: i32) -> (i32, i32) {
    %c0_i32 = arith.constant 0 : i32
    %c0_i32_0 = arith.constant 0 : i32
    %c0_i32_1 = arith.constant 0 : i32
    return %c0_i32, %c0_i32_0 : i32, i32
  }
  func.func @transform_4(%arg0: i32) -> (i32, i32) {
    %c0_i32 = arith.constant 0 : i32
    %c0_i32_0 = arith.constant 0 : i32
    %c0_i32_1 = arith.constant 0 : i32
    return %c0_i32, %c0_i32_0 : i32, i32
  }
  func.func @transform_5(%arg0: i32) -> (i32, i32) {
    %c0_i32 = arith.constant 0 : i32
    %c0_i32_0 = arith.constant 0 : i32
    %c0_i32_1 = arith.constant 0 : i32
    return %c0_i32, %c0_i32_0 : i32, i32
  }
  func.func @transform_6(%arg0: i32) -> (i32, i32) {
    %c0_i32 = arith.constant 0 : i32
    %c0_i32_0 = arith.constant 0 : i32
    %c0_i32_1 = arith.constant 0 : i32
    return %c0_i32, %c0_i32_0 : i32, i32
  }
  func.func @transform_7(%arg0: i32) -> (i32, i32, i32, i32) {
    %c0_i32 = arith.constant 0 : i32
    %c0_i32_0 = arith.constant 0 : i32
    %c0_i32_1 = arith.constant 0 : i32
    %c0_i32_2 = arith.constant 0 : i32
    return %arg0, %c0_i32, %c0_i32_0, %c0_i32_1 : i32, i32, i32, i32
  }
}

</mosaic_0001>

<llo_original>
// kernel: tpu_custom_call.1
$region0: #{tpu_custom_call.1}
  #allocation0 [shape = 'u32[]', space=smem, size = 0x4, offset = 0x4, fixed_abs, tag = 'smem constant byte address 0x4 - core index']
  #allocation1 [shape = 'u32[144,128]{1,0:T(1,128)}', space=vmem, size = 0x12000, scoped, tag = 'internal scratch']
  %s0 = inlined_call_operand.vmem [shape: f32[8,9,9,4], index: 0, kind: input, shape index: {}]
  %s1 = inlined_call_operand.vmem [shape: bf16[36,128], index: 1, kind: input, shape index: {}]
  %s2 = inlined_call_operand.vmem [shape: f32[1,128], index: 2, kind: input, shape index: {}]
  %s3 = inlined_call_operand.vmem [shape: bf16[1152,128], index: 3, kind: input, shape index: {}]
  %s4 = inlined_call_operand.vmem [shape: f32[1,128], index: 4, kind: input, shape index: {}]
  %s5 = inlined_call_operand.vmem [shape: bf16[4,128], index: 5, kind: input, shape index: {}]
  %s6 = inlined_call_operand.vmem [shape: f32[1,128], index: 6, kind: input, shape index: {}]
  %s7 = inlined_call_operand.hbm [shape: f32[2,8,8,128], index: 7, kind: output, shape index: {}]
  %s8 = sld [smem:[#allocation0]]
  $region38: #{tpu_custom_call.1} parent=0
    _
  %s10 = ssub.s32 1, %s8
  %s11 = scalar_select 0, %s10, %s8
  $region1: #{tpu_custom_call.1} parent=0
    #allocation2 [shape = 'u8[65536]{0}', space=vmem, size = 0x10000, scoped, tag = 'output window, operand 0, single buffered']
    #allocation3 [shape = 's32[1]{0}', space=sflag, size = 0x4, scoped, tag = 'scoped memory for tpu_custom_call.1']
    %12 = vsyncpa [#allocation3], 0
    // Predicated region
    $region2: #{tpu_custom_call.1} parent=1 // pred_check
      _
    $region3: #{tpu_custom_call.1} parent=1 // pred_check_branch
      %14 = sbr.rel (0) target = $region5
    $region4: #{tpu_custom_call.1} parent=1 // pred_region
      _
    $region5: #{tpu_custom_call.1} parent=1 // pred_fallthru
      _
    // Predicated region
    $region6: #{tpu_custom_call.1} parent=1 // pred_check
      _
    $region7: #{tpu_custom_call.1} parent=1 // pred_check_branch
      %16 = sbr.rel (0) target = $region9
    $region8: #{tpu_custom_call.1} parent=1 // pred_region
      _
    $region9: #{tpu_custom_call.1} parent=1 // pred_fallthru
      _
    // Predicated region
    $region10: #{tpu_custom_call.1} parent=1 // pred_check
      _
    $region11: #{tpu_custom_call.1} parent=1 // pred_check_branch
      %18 = sbr.rel (0) target = $region13
    $region12: #{tpu_custom_call.1} parent=1 // pred_region
      _
    $region13: #{tpu_custom_call.1} parent=1 // pred_fallthru
      _
    // Predicated region
    $region14: #{tpu_custom_call.1} parent=1 // pred_check
      _
    $region15: #{tpu_custom_call.1} parent=1 // pred_check_branch
      %20 = sbr.rel (0) target = $region17
    $region16: #{tpu_custom_call.1} parent=1 // pred_region
      _
    $region17: #{tpu_custom_call.1} parent=1 // pred_fallthru
      _
    // Predicated region
    $region18: #{tpu_custom_call.1} parent=1 // pred_check
      _
    $region19: #{tpu_custom_call.1} parent=1 // pred_check_branch
      %22 = sbr.rel (0) target = $region21
    $region20: #{tpu_custom_call.1} parent=1 // pred_region
      _
    $region21: #{tpu_custom_call.1} parent=1 // pred_fallthru
      _
    // Predicated region
    $region22: #{tpu_custom_call.1} parent=1 // pred_check
      _
    $region23: #{tpu_custom_call.1} parent=1 // pred_check_branch
      %24 = sbr.rel (0) target = $region25
    $region24: #{tpu_custom_call.1} parent=1 // pred_region
      _
    $region25: #{tpu_custom_call.1} parent=1 // pred_fallthru
      _
    // Predicated region
    $region26: #{tpu_custom_call.1} parent=1 // pred_check
      _
    $region27: #{tpu_custom_call.1} parent=1 // pred_check_branch
      %26 = sbr.rel (0) target = $region29
    $region28: #{tpu_custom_call.1} parent=1 // pred_region
      _
    $region29: #{tpu_custom_call.1} parent=1 // pred_fallthru
      _
    %v28 = vld [vmem:[%s0] sm:$0xff]
    %v29 = vld [vmem:[%s0 + $0x8] sm:$0x1]
    %v30 = vld [vmem:[%s0 + $0x10] sm:$0xff]
    %v31 = vld [vmem:[%s0 + $0x18] sm:$0x1]
    %v32 = vld [vmem:[%s0 + $0x20] sm:$0xff]
    %v33 = vld [vmem:[%s0 + $0x28] sm:$0x1]
    %v34 = vld [vmem:[%s0 + $0x30] sm:$0xff]
    %v35 = vld [vmem:[%s0 + $0x38] sm:$0x1]
    %v36 = vld [vmem:[%s0 + $0x40] sm:$0xff]
    %v37 = vld [vmem:[%s0 + $0x48] sm:$0x1]
    %v38 = vld [vmem:[%s0 + $0x50] sm:$0xff]
    %v39 = vld [vmem:[%s0 + $0x58] sm:$0x1]
    %v40 = vld [vmem:[%s0 + $0x60] sm:$0xff]
    %v41 = vld [vmem:[%s0 + $0x68] sm:$0x1]
    %v42 = vld [vmem:[%s0 + $0x70] sm:$0xff]
    %v43 = vld [vmem:[%s0 + $0x78] sm:$0x1]
    %v44 = vld [vmem:[%s0 + $0x80] sm:$0xff]
    %v45 = vld [vmem:[%s0 + $0x88] sm:$0x1]
    %v46 = vld [vmem:[%s0 + $0x90] sm:$0xff]
    %v47 = vld [vmem:[%s0 + $0xa0] sm:$0xff]
    %v48 = vld [vmem:[%s0 + $0xb0] sm:$0xff]
    %v49 = vld [vmem:[%s0 + $0xc0] sm:$0xff]
    %v50 = vld [vmem:[%s0 + $0xd0] sm:$0xff]
    %v51 = vld [vmem:[%s0 + $0xe0] sm:$0xff]
    %v52 = vld [vmem:[%s0 + $0xf0] sm:$0xff]
    %v53 = vld [vmem:[%s0 + $0x100] sm:$0xff]
    %v54 = vld [vmem:[%s0 + $0x110] sm:$0xff]
    %v55 = vld [vmem:[%s0 + $0x120] sm:$0xff]
    %v56 = vld [vmem:[%s0 + $0x128] sm:$0x1]
    %v57 = vld [vmem:[%s0 + $0x130] sm:$0xff]
    %v58 = vld [vmem:[%s0 + $0x138] sm:$0x1]
    %v59 = vld [vmem:[%s0 + $0x140] sm:$0xff]
    %v60 = vld [vmem:[%s0 + $0x148] sm:$0x1]
    %v61 = vld [vmem:[%s0 + $0x150] sm:$0xff]
    %v62 = vld [vmem:[%s0 + $0x158] sm:$0x1]
    %v63 = vld [vmem:[%s0 + $0x160] sm:$0xff]
    %v64 = vld [vmem:[%s0 + $0x168] sm:$0x1]
    %v65 = vld [vmem:[%s0 + $0x170] sm:$0xff]
    %v66 = vld [vmem:[%s0 + $0x178] sm:$0x1]
    %v67 = vld [vmem:[%s0 + $0x180] sm:$0xff]
    %v68 = vld [vmem:[%s0 + $0x188] sm:$0x1]
    %v69 = vld [vmem:[%s0 + $0x190] sm:$0xff]
    %v70 = vld [vmem:[%s0 + $0x198] sm:$0x1]
    %v71 = vld [vmem:[%s0 + $0x1b0] sm:$0xff]
    %v72 = vld [vmem:[%s0 + $0x1c0] sm:$0xff]
    %v73 = vld [vmem:[%s0 + $0x1d0] sm:$0xff]
    %v74 = vld [vmem:[%s0 + $0x1e0] sm:$0xff]
    %v75 = vld [vmem:[%s0 + $0x1f0] sm:$0xff]
    %v76 = vld [vmem:[%s0 + $0x200] sm:$0xff]
    %v77 = vld [vmem:[%s0 + $0x210] sm:$0xff]
    %v78 = vld [vmem:[%s0 + $0x220] sm:$0xff]
    %v79 = vld [vmem:[%s0 + $0x240] sm:$0xff]
    %v80 = vld [vmem:[%s0 + $0x248] sm:$0x1]
    %v81 = vld [vmem:[%s0 + $0x250] sm:$0xff]
    %v82 = vld [vmem:[%s0 + $0x258] sm:$0x1]
    %v83 = vld [vmem:[%s0 + $0x260] sm:$0xff]
    %v84 = vld [vmem:[%s0 + $0x268] sm:$0x1]
    %v85 = vld [vmem:[%s0 + $0x270] sm:$0xff]
    %v86 = vld [vmem:[%s0 + $0x278] sm:$0x1]
    %v87 = vld [vmem:[%s0 + $0x280] sm:$0xff]
    %v88 = vld [vmem:[%s0 + $0x288] sm:$0x1]
    %v89 = vld [vmem:[%s0 + $0x290] sm:$0xff]
    %v90 = vld [vmem:[%s0 + $0x298] sm:$0x1]
    %v91 = vld [vmem:[%s0 + $0x2a0] sm:$0xff]
    %v92 = vld [vmem:[%s0 + $0x2a8] sm:$0x1]
    %v93 = vld [vmem:[%s0 + $0x2b0] sm:$0xff]
    %v94 = vld [vmem:[%s0 + $0x2b8] sm:$0x1]
    %v95 = vld [vmem:[%s0 + $0x2c0] sm:$0xff]
    %v96 = vld [vmem:[%s0 + $0x2c8] sm:$0x1]
    %v97 = vld [vmem:[%s0 + $0x2d0] sm:$0xff]
    %v98 = vld [vmem:[%s0 + $0x2e0] sm:$0xff]
    %v99 = vld [vmem:[%s0 + $0x2f0] sm:$0xff]
    %v100 = vld [vmem:[%s0 + $0x300] sm:$0xff]
    %v101 = vld [vmem:[%s0 + $0x310] sm:$0xff]
    %v102 = vld [vmem:[%s0 + $0x320] sm:$0xff]
    %v103 = vld [vmem:[%s0 + $0x330] sm:$0xff]
    %v104 = vld [vmem:[%s0 + $0x340] sm:$0xff]
    %v105 = vld [vmem:[%s0 + $0x350] sm:$0xff]
    %v106 = vld [vmem:[%s0 + $0x360] sm:$0xff]
    %v107 = vld [vmem:[%s0 + $0x368] sm:$0x1]
    %v108 = vld [vmem:[%s0 + $0x370] sm:$0xff]
    %v109 = vld [vmem:[%s0 + $0x378] sm:$0x1]
    %v110 = vld [vmem:[%s0 + $0x380] sm:$0xff]
    %v111 = vld [vmem:[%s0 + $0x388] sm:$0x1]
    %v112 = vld [vmem:[%s0 + $0x390] sm:$0xff]
    %v113 = vld [vmem:[%s0 + $0x398] sm:$0x1]
    %v114 = vld [vmem:[%s0 + $0x3a0] sm:$0xff]
    %v115 = vld [vmem:[%s0 + $0x3a8] sm:$0x1]
    %v116 = vld [vmem:[%s0 + $0x3b0] sm:$0xff]
    %v117 = vld [vmem:[%s0 + $0x3b8] sm:$0x1]
    %v118 = vld [vmem:[%s0 + $0x3c0] sm:$0xff]
    %v119 = vld [vmem:[%s0 + $0x3c8] sm:$0x1]
    %v120 = vld [vmem:[%s0 + $0x3d0] sm:$0xff]
    %v121 = vld [vmem:[%s0 + $0x3d8] sm:$0x1]
    %v122 = vld [vmem:[%s0 + $0x3f0] sm:$0xff]
    %v123 = vld [vmem:[%s0 + $0x400] sm:$0xff]
    %v124 = vld [vmem:[%s0 + $0x410] sm:$0xff]
    %v125 = vld [vmem:[%s0 + $0x420] sm:$0xff]
    %v126 = vld [vmem:[%s0 + $0x430] sm:$0xff]
    %v127 = vld [vmem:[%s0 + $0x440] sm:$0xff]
    %v128 = vld [vmem:[%s0 + $0x450] sm:$0xff]
    %v129 = vld [vmem:[%s0 + $0x460] sm:$0xff]
    %vm162 = vcmask 1046528
    %v163 = vrot.slane %v28, 1
    %v164 = vrot.slane %v29, 1
    %v165 = vsel %vm162, %v163, %v164
    %v166 = vrot.slane %v30, 1
    %v167 = vrot.slane %v31, 1
    %v168 = vsel %vm162, %v166, %v167
    %v169 = vrot.slane %v32, 1
    %v170 = vrot.slane %v33, 1
    %v171 = vsel %vm162, %v169, %v170
    %v172 = vrot.slane %v34, 1
    %v173 = vrot.slane %v35, 1
    %v174 = vsel %vm162, %v172, %v173
    %v175 = vrot.slane %v36, 1
    %v176 = vrot.slane %v37, 1
    %v177 = vsel %vm162, %v175, %v176
    %v178 = vrot.slane %v38, 1
    %v179 = vrot.slane %v39, 1
    %v180 = vsel %vm162, %v178, %v179
    %v181 = vrot.slane %v40, 1
    %v182 = vrot.slane %v41, 1
    %v183 = vsel %vm162, %v181, %v182
    %v184 = vrot.slane %v42, 1
    %v185 = vrot.slane %v43, 1
    %v186 = vsel %vm162, %v184, %v185
    %v187 = vrot.slane %v79, 1
    %v188 = vrot.slane %v80, 1
    %v189 = vsel %vm162, %v187, %v188
    %v190 = vrot.slane %v81, 1
    %v191 = vrot.slane %v82, 1
    %v192 = vsel %vm162, %v190, %v191
    %v193 = vrot.slane %v83, 1
    %v194 = vrot.slane %v84, 1
    %v195 = vsel %vm162, %v193, %v194
    %v196 = vrot.slane %v85, 1
    %v197 = vrot.slane %v86, 1
    %v198 = vsel %vm162, %v196, %v197
    %v199 = vrot.slane %v87, 1
    %v200 = vrot.slane %v88, 1
    %v201 = vsel %vm162, %v199, %v200
    %v202 = vrot.slane %v89, 1
    %v203 = vrot.slane %v90, 1
    %v204 = vsel %vm162, %v202, %v203
    %v205 = vrot.slane %v91, 1
    %v206 = vrot.slane %v92, 1
    %v207 = vsel %vm162, %v205, %v206
    %v208 = vrot.slane %v93, 1
    %v209 = vrot.slane %v94, 1
    %v210 = vsel %vm162, %v208, %v209
    %v243 = vrot.slane %v55, 1
    %v244 = vrot.slane %v56, 1
    %v245 = vsel %vm162, %v243, %v244
    %v246 = vrot.slane %v57, 1
    %v247 = vrot.slane %v58, 1
    %v248 = vsel %vm162, %v246, %v247
    %v249 = vrot.slane %v59, 1
    %v250 = vrot.slane %v60, 1
    %v251 = vsel %vm162, %v249, %v250
    %v252 = vrot.slane %v61, 1
    %v253 = vrot.slane %v62, 1
    %v254 = vsel %vm162, %v252, %v253
    %v255 = vrot.slane %v63, 1
    %v256 = vrot.slane %v64, 1
    %v257 = vsel %vm162, %v255, %v256
    %v258 = vrot.slane %v65, 1
    %v259 = vrot.slane %v66, 1
    %v260 = vsel %vm162, %v258, %v259
    %v261 = vrot.slane %v67, 1
    %v262 = vrot.slane %v68, 1
    %v263 = vsel %vm162, %v261, %v262
    %v264 = vrot.slane %v69, 1
    %v265 = vrot.slane %v70, 1
    %v266 = vsel %vm162, %v264, %v265
    %v267 = vrot.slane %v106, 1
    %v268 = vrot.slane %v107, 1
    %v269 = vsel %vm162, %v267, %v268
    %v270 = vrot.slane %v108, 1
    %v271 = vrot.slane %v109, 1
    %v272 = vsel %vm162, %v270, %v271
    %v273 = vrot.slane %v110, 1
    %v274 = vrot.slane %v111, 1
    %v275 = vsel %vm162, %v273, %v274
    %v276 = vrot.slane %v112, 1
    %v277 = vrot.slane %v113, 1
    %v278 = vsel %vm162, %v276, %v277
    %v279 = vrot.slane %v114, 1
    %v280 = vrot.slane %v115, 1
    %v281 = vsel %vm162, %v279, %v280
    %v282 = vrot.slane %v116, 1
    %v283 = vrot.slane %v117, 1
    %v284 = vsel %vm162, %v282, %v283
    %v285 = vrot.slane %v118, 1
    %v286 = vrot.slane %v119, 1
    %v287 = vsel %vm162, %v285, %v286
    %v288 = vrot.slane %v120, 1
    %v289 = vrot.slane %v121, 1
    %v290 = vsel %vm162, %v288, %v289
    %v295 = vrot.slane %v44, 1
    %v296 = vrot.slane %v45, 1
    %v297 = vsel %vm162, %v295, %v296
    %v298 = vrot.slane %v95, 1
    %v299 = vrot.slane %v96, 1
    %v300 = vsel %vm162, %v298, %v299
    %317 = vrot.lane.b32.xlu0 %v46, 4
    %v318 = vpop.permute.xlu0 %317
    %319 = vrot.lane.b32.xlu0 %v47, 4
    %v320 = vpop.permute.xlu0 %319
    %321 = vrot.lane.b32.xlu0 %v48, 4
    %v322 = vpop.permute.xlu0 %321
    %323 = vrot.lane.b32.xlu0 %v49, 4
    %v324 = vpop.permute.xlu0 %323
    %325 = vrot.lane.b32.xlu0 %v50, 4
    %v326 = vpop.permute.xlu0 %325
    %327 = vrot.lane.b32.xlu0 %v51, 4
    %v328 = vpop.permute.xlu0 %327
    %329 = vrot.lane.b32.xlu0 %v52, 4
    %v330 = vpop.permute.xlu0 %329
    %331 = vrot.lane.b32.xlu0 %v53, 4
    %v332 = vpop.permute.xlu0 %331
    %333 = vrot.lane.b32.xlu0 %v97, 4
    %v334 = vpop.permute.xlu0 %333
    %335 = vrot.lane.b32.xlu0 %v98, 4
    %v336 = vpop.permute.xlu0 %335
    %337 = vrot.lane.b32.xlu0 %v99, 4
    %v338 = vpop.permute.xlu0 %337
    %339 = vrot.lane.b32.xlu0 %v100, 4
    %v340 = vpop.permute.xlu0 %339
    %341 = vrot.lane.b32.xlu0 %v101, 4
    %v342 = vpop.permute.xlu0 %341
    %343 = vrot.lane.b32.xlu0 %v102, 4
    %v344 = vpop.permute.xlu0 %343
    %345 = vrot.lane.b32.xlu0 %v103, 4
    %v346 = vpop.permute.xlu0 %345
    %347 = vrot.lane.b32.xlu0 %v104, 4
    %v348 = vpop.permute.xlu0 %347
    %365 = vrot.lane.b32.xlu0 %v165, 8
    %v366 = vpop.permute.xlu0 %365
    %367 = vrot.lane.b32.xlu0 %v168, 8
    %v368 = vpop.permute.xlu0 %367
    %369 = vrot.lane.b32.xlu0 %v171, 8
    %v370 = vpop.permute.xlu0 %369
    %371 = vrot.lane.b32.xlu0 %v174, 8
    %v372 = vpop.permute.xlu0 %371
    %373 = vrot.lane.b32.xlu0 %v177, 8
    %v374 = vpop.permute.xlu0 %373
    %375 = vrot.lane.b32.xlu0 %v180, 8
    %v376 = vpop.permute.xlu0 %375
    %377 = vrot.lane.b32.xlu0 %v183, 8
    %v378 = vpop.permute.xlu0 %377
    %379 = vrot.lane.b32.xlu0 %v186, 8
    %v380 = vpop.permute.xlu0 %379
    %381 = vrot.lane.b32.xlu0 %v189, 8
    %v382 = vpop.permute.xlu0 %381
    %383 = vrot.lane.b32.xlu0 %v192, 8
    %v384 = vpop.permute.xlu0 %383
    %385 = vrot.lane.b32.xlu0 %v195, 8
    %v386 = vpop.permute.xlu0 %385
    %387 = vrot.lane.b32.xlu0 %v198, 8
    %v388 = vpop.permute.xlu0 %387
    %389 = vrot.lane.b32.xlu0 %v201, 8
    %v390 = vpop.permute.xlu0 %389
    %391 = vrot.lane.b32.xlu0 %v204, 8
    %v392 = vpop.permute.xlu0 %391
    %393 = vrot.lane.b32.xlu0 %v207, 8
    %v394 = vpop.permute.xlu0 %393
    %395 = vrot.lane.b32.xlu0 %v210, 8
    %v396 = vpop.permute.xlu0 %395
    %413 = vrot.lane.b32.xlu0 %v55, 12
    %v414 = vpop.permute.xlu0 %413
    %415 = vrot.lane.b32.xlu0 %v57, 12
    %v416 = vpop.permute.xlu0 %415
    %417 = vrot.lane.b32.xlu0 %v59, 12
    %v418 = vpop.permute.xlu0 %417
    %419 = vrot.lane.b32.xlu0 %v61, 12
    %v420 = vpop.permute.xlu0 %419
    %421 = vrot.lane.b32.xlu0 %v63, 12
    %v422 = vpop.permute.xlu0 %421
    %423 = vrot.lane.b32.xlu0 %v65, 12
    %v424 = vpop.permute.xlu0 %423
    %425 = vrot.lane.b32.xlu0 %v67, 12
    %v426 = vpop.permute.xlu0 %425
    %427 = vrot.lane.b32.xlu0 %v69, 12
    %v428 = vpop.permute.xlu0 %427
    %429 = vrot.lane.b32.xlu0 %v106, 12
    %v430 = vpop.permute.xlu0 %429
    %431 = vrot.lane.b32.xlu0 %v108, 12
    %v432 = vpop.permute.xlu0 %431
    %433 = vrot.lane.b32.xlu0 %v110, 12
    %v434 = vpop.permute.xlu0 %433
    %435 = vrot.lane.b32.xlu0 %v112, 12
    %v436 = vpop.permute.xlu0 %435
    %437 = vrot.lane.b32.xlu0 %v114, 12
    %v438 = vpop.permute.xlu0 %437
    %439 = vrot.lane.b32.xlu0 %v116, 12
    %v440 = vpop.permute.xlu0 %439
    %441 = vrot.lane.b32.xlu0 %v118, 12
    %v442 = vpop.permute.xlu0 %441
    %443 = vrot.lane.b32.xlu0 %v120, 12
    %v444 = vpop.permute.xlu0 %443
    %477 = vrot.lane.b32.xlu0 %v71, 16
    %v478 = vpop.permute.xlu0 %477
    %479 = vrot.lane.b32.xlu0 %v72, 16
    %v480 = vpop.permute.xlu0 %479
    %481 = vrot.lane.b32.xlu0 %v73, 16
    %v482 = vpop.permute.xlu0 %481
    %483 = vrot.lane.b32.xlu0 %v74, 16
    %v484 = vpop.permute.xlu0 %483
    %485 = vrot.lane.b32.xlu0 %v75, 16
    %v486 = vpop.permute.xlu0 %485
    %487 = vrot.lane.b32.xlu0 %v76, 16
    %v488 = vpop.permute.xlu0 %487
    %489 = vrot.lane.b32.xlu0 %v77, 16
    %v490 = vpop.permute.xlu0 %489
    %491 = vrot.lane.b32.xlu0 %v78, 16
    %v492 = vpop.permute.xlu0 %491
    %493 = vrot.lane.b32.xlu0 %v122, 16
    %v494 = vpop.permute.xlu0 %493
    %495 = vrot.lane.b32.xlu0 %v123, 16
    %v496 = vpop.permute.xlu0 %495
    %497 = vrot.lane.b32.xlu0 %v124, 16
    %v498 = vpop.permute.xlu0 %497
    %499 = vrot.lane.b32.xlu0 %v125, 16
    %v500 = vpop.permute.xlu0 %499
    %501 = vrot.lane.b32.xlu0 %v126, 16
    %v502 = vpop.permute.xlu0 %501
    %503 = vrot.lane.b32.xlu0 %v127, 16
    %v504 = vpop.permute.xlu0 %503
    %505 = vrot.lane.b32.xlu0 %v128, 16
    %v506 = vpop.permute.xlu0 %505
    %507 = vrot.lane.b32.xlu0 %v129, 16
    %v508 = vpop.permute.xlu0 %507
    %525 = vrot.lane.b32.xlu0 %v245, 20
    %v526 = vpop.permute.xlu0 %525
    %527 = vrot.lane.b32.xlu0 %v248, 20
    %v528 = vpop.permute.xlu0 %527
    %529 = vrot.lane.b32.xlu0 %v251, 20
    %v530 = vpop.permute.xlu0 %529
    %531 = vrot.lane.b32.xlu0 %v254, 20
    %v532 = vpop.permute.xlu0 %531
    %533 = vrot.lane.b32.xlu0 %v257, 20
    %v534 = vpop.permute.xlu0 %533
    %535 = vrot.lane.b32.xlu0 %v260, 20
    %v536 = vpop.permute.xlu0 %535
    %537 = vrot.lane.b32.xlu0 %v263, 20
    %v538 = vpop.permute.xlu0 %537
    %539 = vrot.lane.b32.xlu0 %v266, 20
    %v540 = vpop.permute.xlu0 %539
    %541 = vrot.lane.b32.xlu0 %v269, 20
    %v542 = vpop.permute.xlu0 %541
    %543 = vrot.lane.b32.xlu0 %v272, 20
    %v544 = vpop.permute.xlu0 %543
    %545 = vrot.lane.b32.xlu0 %v275, 20
    %v546 = vpop.permute.xlu0 %545
    %547 = vrot.lane.b32.xlu0 %v278, 20
    %v548 = vpop.permute.xlu0 %547
    %549 = vrot.lane.b32.xlu0 %v281, 20
    %v550 = vpop.permute.xlu0 %549
    %551 = vrot.lane.b32.xlu0 %v284, 20
    %v552 = vpop.permute.xlu0 %551
    %553 = vrot.lane.b32.xlu0 %v287, 20
    %v554 = vpop.permute.xlu0 %553
    %555 = vrot.lane.b32.xlu0 %v290, 20
    %v556 = vpop.permute.xlu0 %555
    %573 = vrot.lane.b32.xlu0 %v30, 24
    %v574 = vpop.permute.xlu0 %573
    %575 = vrot.lane.b32.xlu0 %v32, 24
    %v576 = vpop.permute.xlu0 %575
    %577 = vrot.lane.b32.xlu0 %v34, 24
    %v578 = vpop.permute.xlu0 %577
    %579 = vrot.lane.b32.xlu0 %v36, 24
    %v580 = vpop.permute.xlu0 %579
    %581 = vrot.lane.b32.xlu0 %v38, 24
    %v582 = vpop.permute.xlu0 %581
    %583 = vrot.lane.b32.xlu0 %v40, 24
    %v584 = vpop.permute.xlu0 %583
    %585 = vrot.lane.b32.xlu0 %v42, 24
    %v586 = vpop.permute.xlu0 %585
    %587 = vrot.lane.b32.xlu0 %v44, 24
    %v588 = vpop.permute.xlu0 %587
    %589 = vrot.lane.b32.xlu0 %v81, 24
    %v590 = vpop.permute.xlu0 %589
    %591 = vrot.lane.b32.xlu0 %v83, 24
    %v592 = vpop.permute.xlu0 %591
    %593 = vrot.lane.b32.xlu0 %v85, 24
    %v594 = vpop.permute.xlu0 %593
    %595 = vrot.lane.b32.xlu0 %v87, 24
    %v596 = vpop.permute.xlu0 %595
    %597 = vrot.lane.b32.xlu0 %v89, 24
    %v598 = vpop.permute.xlu0 %597
    %599 = vrot.lane.b32.xlu0 %v91, 24
    %v600 = vpop.permute.xlu0 %599
    %601 = vrot.lane.b32.xlu0 %v93, 24
    %v602 = vpop.permute.xlu0 %601
    %603 = vrot.lane.b32.xlu0 %v95, 24
    %v604 = vpop.permute.xlu0 %603
    %623 = vrot.lane.b32.xlu0 %v47, 28
    %v624 = vpop.permute.xlu0 %623
    %625 = vrot.lane.b32.xlu0 %v48, 28
    %v626 = vpop.permute.xlu0 %625
    %627 = vrot.lane.b32.xlu0 %v49, 28
    %v628 = vpop.permute.xlu0 %627
    %629 = vrot.lane.b32.xlu0 %v50, 28
    %v630 = vpop.permute.xlu0 %629
    %631 = vrot.lane.b32.xlu0 %v51, 28
    %v632 = vpop.permute.xlu0 %631
    %633 = vrot.lane.b32.xlu0 %v52, 28
    %v634 = vpop.permute.xlu0 %633
    %635 = vrot.lane.b32.xlu0 %v53, 28
    %v636 = vpop.permute.xlu0 %635
    %637 = vrot.lane.b32.xlu0 %v54, 28
    %v638 = vpop.permute.xlu0 %637
    %639 = vrot.lane.b32.xlu0 %v98, 28
    %v640 = vpop.permute.xlu0 %639
    %641 = vrot.lane.b32.xlu0 %v99, 28
    %v642 = vpop.permute.xlu0 %641
    %643 = vrot.lane.b32.xlu0 %v100, 28
    %v644 = vpop.permute.xlu0 %643
    %645 = vrot.lane.b32.xlu0 %v101, 28
    %v646 = vpop.permute.xlu0 %645
    %647 = vrot.lane.b32.xlu0 %v102, 28
    %v648 = vpop.permute.xlu0 %647
    %649 = vrot.lane.b32.xlu0 %v103, 28
    %v650 = vpop.permute.xlu0 %649
    %651 = vrot.lane.b32.xlu0 %v104, 28
    %v652 = vpop.permute.xlu0 %651
    %653 = vrot.lane.b32.xlu0 %v105, 28
    %v654 = vpop.permute.xlu0 %653
    %671 = vrot.lane.b32.xlu0 %v168, 32
    %v672 = vpop.permute.xlu0 %671
    %673 = vrot.lane.b32.xlu0 %v171, 32
    %v674 = vpop.permute.xlu0 %673
    %675 = vrot.lane.b32.xlu0 %v174, 32
    %v676 = vpop.permute.xlu0 %675
    %677 = vrot.lane.b32.xlu0 %v177, 32
    %v678 = vpop.permute.xlu0 %677
    %679 = vrot.lane.b32.xlu0 %v180, 32
    %v680 = vpop.permute.xlu0 %679
    %681 = vrot.lane.b32.xlu0 %v183, 32
    %v682 = vpop.permute.xlu0 %681
    %683 = vrot.lane.b32.xlu0 %v186, 32
    %v684 = vpop.permute.xlu0 %683
    %685 = vrot.lane.b32.xlu0 %v297, 32
    %v686 = vpop.permute.xlu0 %685
    %687 = vrot.lane.b32.xlu0 %v192, 32
    %v688 = vpop.permute.xlu0 %687
    %689 = vrot.lane.b32.xlu0 %v195, 32
    %v690 = vpop.permute.xlu0 %689
    %691 = vrot.lane.b32.xlu0 %v198, 32
    %v692 = vpop.permute.xlu0 %691
    %693 = vrot.lane.b32.xlu0 %v201, 32
    %v694 = vpop.permute.xlu0 %693
    %695 = vrot.lane.b32.xlu0 %v204, 32
    %v696 = vpop.permute.xlu0 %695
    %697 = vrot.lane.b32.xlu0 %v207, 32
    %v698 = vpop.permute.xlu0 %697
    %699 = vrot.lane.b32.xlu0 %v210, 32
    %v700 = vpop.permute.xlu0 %699
    %701 = vrot.lane.b32.xlu0 %v300, 32
    %v702 = vpop.permute.xlu0 %701
    %vm719 = vcmask 31744
    %v720 = vsel %vm719, %v28, %v318
    %v721 = vsel %vm719, %v30, %v320
    %v722 = vsel %vm719, %v32, %v322
    %v723 = vsel %vm719, %v34, %v324
    %v724 = vsel %vm719, %v36, %v326
    %v725 = vsel %vm719, %v38, %v328
    %v726 = vsel %vm719, %v40, %v330
    %v727 = vsel %vm719, %v42, %v332
    %v728 = vsel %vm719, %v79, %v334
    %v729 = vsel %vm719, %v81, %v336
    %v730 = vsel %vm719, %v83, %v338
    %v731 = vsel %vm719, %v85, %v340
    %v732 = vsel %vm719, %v87, %v342
    %v733 = vsel %vm719, %v89, %v344
    %v734 = vsel %vm719, %v91, %v346
    %v735 = vsel %vm719, %v93, %v348
    %vm736 = vcmask 64512
    %v737 = vsel %vm736, %v720, %v366
    %v738 = vsel %vm736, %v721, %v368
    %v739 = vsel %vm736, %v722, %v370
    %v740 = vsel %vm736, %v723, %v372
    %v741 = vsel %vm736, %v724, %v374
    %v742 = vsel %vm736, %v725, %v376
    %v743 = vsel %vm736, %v726, %v378
    %v744 = vsel %vm736, %v727, %v380
    %v745 = vsel %vm736, %v728, %v382
    %v746 = vsel %vm736, %v729, %v384
    %v747 = vsel %vm736, %v730, %v386
    %v748 = vsel %vm736, %v731, %v388
    %v749 = vsel %vm736, %v732, %v390
    %v750 = vsel %vm736, %v733, %v392
    %v751 = vsel %vm736, %v734, %v394
    %v752 = vsel %vm736, %v735, %v396
    %vm753 = vcmask 97280
    %v754 = vsel %vm753, %v737, %v414
    %v755 = vsel %vm753, %v738, %v416
    %v756 = vsel %vm753, %v739, %v418
    %v757 = vsel %vm753, %v740, %v420
    %v758 = vsel %vm753, %v741, %v422
    %v759 = vsel %vm753, %v742, %v424
    %v760 = vsel %vm753, %v743, %v426
    %v761 = vsel %vm753, %v744, %v428
    %v762 = vsel %vm753, %v745, %v430
    %v763 = vsel %vm753, %v746, %v432
    %v764 = vsel %vm753, %v747, %v434
    %v765 = vsel %vm753, %v748, %v436
    %v766 = vsel %vm753, %v749, %v438
    %v767 = vsel %vm753, %v750, %v440
    %v768 = vsel %vm753, %v751, %v442
    %v769 = vsel %vm753, %v752, %v444
    %vm770 = vcmask 130048
    %v771 = vsel %vm770, %v754, %v478
    %v772 = vsel %vm770, %v755, %v480
    %v773 = vsel %vm770, %v756, %v482
    %v774 = vsel %vm770, %v757, %v484
    %v775 = vsel %vm770, %v758, %v486
    %v776 = vsel %vm770, %v759, %v488
    %v777 = vsel %vm770, %v760, %v490
    %v778 = vsel %vm770, %v761, %v492
    %v779 = vsel %vm770, %v762, %v494
    %v780 = vsel %vm770, %v763, %v496
    %v781 = vsel %vm770, %v764, %v498
    %v782 = vsel %vm770, %v765, %v500
    %v783 = vsel %vm770, %v766, %v502
    %v784 = vsel %vm770, %v767, %v504
    %v785 = vsel %vm770, %v768, %v506
    %v786 = vsel %vm770, %v769, %v508
    %vm787 = vcmask 162816
    %v788 = vsel %vm787, %v771, %v526
    %v789 = vsel %vm787, %v772, %v528
    %v790 = vsel %vm787, %v773, %v530
    %v791 = vsel %vm787, %v774, %v532
    %v792 = vsel %vm787, %v775, %v534
    %v793 = vsel %vm787, %v776, %v536
    %v794 = vsel %vm787, %v777, %v538
    %v795 = vsel %vm787, %v778, %v540
    %v796 = vsel %vm787, %v779, %v542
    %v797 = vsel %vm787, %v780, %v544
    %v798 = vsel %vm787, %v781, %v546
    %v799 = vsel %vm787, %v782, %v548
    %v800 = vsel %vm787, %v783, %v550
    %v801 = vsel %vm787, %v784, %v552
    %v802 = vsel %vm787, %v785, %v554
    %v803 = vsel %vm787, %v786, %v556
    %vm804 = vcmask 195584
    %v805 = vsel %vm804, %v788, %v574
    %v806 = vsel %vm804, %v789, %v576
    %v807 = vsel %vm804, %v790, %v578
    %v808 = vsel %vm804, %v791, %v580
    %v809 = vsel %vm804, %v792, %v582
    %v810 = vsel %vm804, %v793, %v584
    %v811 = vsel %vm804, %v794, %v586
    %v812 = vsel %vm804, %v795, %v588
    %v813 = vsel %vm804, %v796, %v590
    %v814 = vsel %vm804, %v797, %v592
    %v815 = vsel %vm804, %v798, %v594
    %v816 = vsel %vm804, %v799, %v596
    %v817 = vsel %vm804, %v800, %v598
    %v818 = vsel %vm804, %v801, %v600
    %v819 = vsel %vm804, %v802, %v602
    %v820 = vsel %vm804, %v803, %v604
    %vm821 = vcmask 228352
    %v822 = vsel %vm821, %v805, %v624
    %v823 = vsel %vm821, %v806, %v626
    %v824 = vsel %vm821, %v807, %v628
    %v825 = vsel %vm821, %v808, %v630
    %v826 = vsel %vm821, %v809, %v632
    %v827 = vsel %vm821, %v810, %v634
    %v828 = vsel %vm821, %v811, %v636
    %v829 = vsel %vm821, %v812, %v638
    %v830 = vsel %vm821, %v813, %v640
    %v831 = vsel %vm821, %v814, %v642
    %v832 = vsel %vm821, %v815, %v644
    %v833 = vsel %vm821, %v816, %v646
    %v834 = vsel %vm821, %v817, %v648
    %v835 = vsel %vm821, %v818, %v650
    %v836 = vsel %vm821, %v819, %v652
    %v837 = vsel %vm821, %v820, %v654
    %vm838 = vcmask 261120
    %v839 = vsel %vm838, %v822, %v672
    %v840 = vsel %vm838, %v823, %v674
    %v841 = vsel %vm838, %v824, %v676
    %v842 = vsel %vm838, %v825, %v678
    %v843 = vsel %vm838, %v826, %v680
    %v844 = vsel %vm838, %v827, %v682
    %v845 = vsel %vm838, %v828, %v684
    %v846 = vsel %vm838, %v829, %v686
    %v847 = vsel %vm838, %v830, %v688
    %v848 = vsel %vm838, %v831, %v690
    %v849 = vsel %vm838, %v832, %v692
    %v850 = vsel %vm838, %v833, %v694
    %v851 = vsel %vm838, %v834, %v696
    %v852 = vsel %vm838, %v835, %v698
    %v853 = vsel %vm838, %v836, %v700
    %v854 = vsel %vm838, %v837, %v702
    %v855 = vpack.c.bf16 %v840, %v839
    %v856 = vpack.c.bf16 %v842, %v841
    %v857 = vpack.c.bf16 %v844, %v843
    %v858 = vpack.c.bf16 %v846, %v845
    %v859 = vpack.c.bf16 %v848, %v847
    %v860 = vpack.c.bf16 %v850, %v849
    %v861 = vpack.c.bf16 %v852, %v851
    %v862 = vpack.c.bf16 %v854, %v853
    %v863 = vld [vmem:[%s1] sm:$0xf]
    %v864 = vld [vmem:[%s1 + $0x4] sm:$0xf]
    %v865 = vld [vmem:[%s1 + $0x8] sm:$0xf]
    %v866 = vld [vmem:[%s1 + $0xc] sm:$0xf]
    %v867 = vld [vmem:[%s1 + $0x10] sm:$0x3]
    %v868 = vld [vmem:[%s2] sm:$0x1]
    %v870 = vlaneseq
    %v871 = vshrl.u32 %v870, 7
    %v872 = vsub.s32 0, %v871
    %v873 = vrot.slane %v868, %v872
    %v880 = vunpack.c.l.b16 %v863
    %v881 = vunpack.c.l.b16 %v864
    %v882 = vunpack.c.l.b16 %v865
    %v883 = vunpack.c.l.b16 %v866
    %v884 = vunpack.c.l.b16 %v867
    %v885 = vpack.c.b16 %v881, %v880
    %v886 = vpack.c.b16 %v883, %v882
    %v887 = vpack.c.b16 %v884, %v884
    %vm890 = vcmask 293888
    %v892 = vsel %vm890, %v855, 0
    %v895 = vsel %vm890, %v856, 0
    %v898 = vsel %vm890, %v857, 0
    %v901 = vsel %vm890, %v858, 0
    %v904 = vsel %vm890, %v859, 0
    %v907 = vsel %vm890, %v860, 0
    %v910 = vsel %vm890, %v861, 0
    %v913 = vsel %vm890, %v862, 0
    %vm915 = vcmask 1041408
    %v917 = vsel %vm915, %v887, 0
    %919 = vmatprep.subr.bf16.mxu0 0
    %920 = vmatpush1.bf16.msra.mxu0 %v885
    %921 = vmatprep.subr.bf16.mxu0 0
    %922 = vmatpush1.bf16.msra.mxu0 %v886
    %923 = vmatprep.subr.bf16.mxu0 0
    %924 = vmatpush1.bf16.msra.mxu0 %v917
    %925 = vmatprep.subr.bf16.mxu0 0
    %926 = vmatpush1.bf16.msra.mxu0 0
    %927 = vmatprep.subr.bf16.mxu0 0
    %928 = vmatpush1.bf16.msra.mxu0 0
    %929 = vmatprep.subr.bf16.mxu0 0
    %930 = vmatpush1.bf16.msra.mxu0 0
    %931 = vmatprep.subr.bf16.mxu0 0
    %932 = vmatpush1.bf16.msra.mxu0 0
    %933 = vmatprep.subr.bf16.mxu0 0
    %934 = vmatpush1.bf16.msra.mxu0 0
    %935 = vmatprep.subr.bf16.mxu0 0
    %936 = vmatpush1.bf16.msra.mxu0 0
    %937 = vmatprep.subr.bf16.mxu0 0
    %938 = vmatpush1.bf16.msra.mxu0 0
    %939 = vmatprep.subr.bf16.mxu0 0
    %940 = vmatpush1.bf16.msra.mxu0 0
    %941 = vmatprep.subr.bf16.mxu0 0
    %942 = vmatpush1.bf16.msra.mxu0 0
    %943 = vmatprep.subr.bf16.mxu0 0
    %944 = vmatpush1.bf16.msra.mxu0 0
    %945 = vmatprep.subr.bf16.mxu0 0
    %946 = vmatpush1.bf16.msra.mxu0 0
    %947 = vmatprep.subr.bf16.mxu0 0
    %948 = vmatpush1.bf16.msra.mxu0 0
    %949 = vmatprep.subr.bf16.mxu0 0
    %950 = vmatpush1.bf16.msra.mxu0 0
    %951 = vmatprep.mubr.bf16.mxu0 0
    %952 = vmatmul.mubr.bf16.gmra.mrb[0].mxu0 %v892
    %v953 = vpop.f32.mrb[0].mxu0
    %v954 = vadd.f32 %v873, %v953
    %v955 = vpop.f32.mrb[0].mxu0
    %v956 = vpop.f32.mrb[0].mxu0
    %v957 = vadd.f32 %v873, %v956
    %v958 = vpop.f32.mrb[0].mxu0
    %959 = vmatprep.mubr.bf16.mxu0 0
    %960 = vmatmul.mubr.bf16.gmra.mrb[0].mxu0 %v895
    %v961 = vpop.f32.mrb[0].mxu0
    %v962 = vadd.f32 %v873, %v961
    %v963 = vpop.f32.mrb[0].mxu0
    %v964 = vpop.f32.mrb[0].mxu0
    %v965 = vadd.f32 %v873, %v964
    %v966 = vpop.f32.mrb[0].mxu0
    %967 = vmatprep.mubr.bf16.mxu0 0
    %968 = vmatmul.mubr.bf16.gmra.mrb[0].mxu0 %v898
    %v969 = vpop.f32.mrb[0].mxu0
    %v970 = vadd.f32 %v873, %v969
    %v971 = vpop.f32.mrb[0].mxu0
    %v972 = vpop.f32.mrb[0].mxu0
    %v973 = vadd.f32 %v873, %v972
    %v974 = vpop.f32.mrb[0].mxu0
    %975 = vmatprep.mubr.bf16.mxu0 0
    %976 = vmatmul.mubr.bf16.gmra.mrb[0].mxu0 %v901
    %v977 = vpop.f32.mrb[0].mxu0
    %v978 = vadd.f32 %v873, %v977
    %v979 = vpop.f32.mrb[0].mxu0
    %v980 = vpop.f32.mrb[0].mxu0
    %v981 = vadd.f32 %v873, %v980
    %v982 = vpop.f32.mrb[0].mxu0
    %983 = vmatprep.mubr.bf16.mxu0 0
    %984 = vmatmul.mubr.bf16.gmra.mrb[0].mxu0 %v904
    %v985 = vpop.f32.mrb[0].mxu0
    %v986 = vadd.f32 %v873, %v985
    %v987 = vpop.f32.mrb[0].mxu0
    %v988 = vpop.f32.mrb[0].mxu0
    %v989 = vadd.f32 %v873, %v988
    %v990 = vpop.f32.mrb[0].mxu0
    %991 = vmatprep.mubr.bf16.mxu0 0
    %992 = vmatmul.mubr.bf16.gmra.mrb[0].mxu0 %v907
    %v993 = vpop.f32.mrb[0].mxu0
    %v994 = vadd.f32 %v873, %v993
    %v995 = vpop.f32.mrb[0].mxu0
    %v996 = vpop.f32.mrb[0].mxu0
    %v997 = vadd.f32 %v873, %v996
    %v998 = vpop.f32.mrb[0].mxu0
    %999 = vmatprep.mubr.bf16.mxu0 0
    %1000 = vmatmul.mubr.bf16.gmra.mrb[0].mxu0 %v910
    %v1001 = vpop.f32.mrb[0].mxu0
    %v1002 = vadd.f32 %v873, %v1001
    %v1003 = vpop.f32.mrb[0].mxu0
    %v1004 = vpop.f32.mrb[0].mxu0
    %v1005 = vadd.f32 %v873, %v1004
    %v1006 = vpop.f32.mrb[0].mxu0
    %1007 = vmatprep.mubr.bf16.mxu0 0
    %1008 = vmatmul.mubr.bf16.gmra.mrb[0].mxu0 %v913
    %v1009 = vpop.f32.mrb[0].mxu0
    %v1010 = vadd.f32 %v873, %v1009
    %v1011 = vpop.f32.mrb[0].mxu0
    %v1012 = vpop.f32.mrb[0].mxu0
    %v1013 = vadd.f32 %v873, %v1012
    %v1014 = vpop.f32.mrb[0].mxu0
    %1015 = vdwg.mxu0
    %v1016 = vmax.f32 %v954, 0.0
    %v1017 = vmax.f32 %v957, 0.0
    %v1018 = vmax.f32 %v962, 0.0
    %v1019 = vmax.f32 %v965, 0.0
    %v1020 = vmax.f32 %v970, 0.0
    %v1021 = vmax.f32 %v973, 0.0
    %v1022 = vmax.f32 %v978, 0.0
    %v1023 = vmax.f32 %v981, 0.0
    %v1024 = vmax.f32 %v986, 0.0
    %v1025 = vmax.f32 %v989, 0.0
    %v1026 = vmax.f32 %v994, 0.0
    %v1027 = vmax.f32 %v997, 0.0
    %v1028 = vmax.f32 %v1002, 0.0
    %v1029 = vmax.f32 %v1005, 0.0
    %v1030 = vmax.f32 %v1010, 0.0
    %v1031 = vmax.f32 %v1013, 0.0
    %v1049 = vrot.slane 0.0, 7
    %v1050 = vrot.slane %v1016, 7
    %v1051 = vrot.slane %v1017, 7
    %v1052 = vrot.slane %v1018, 7
    %v1053 = vrot.slane %v1019, 7
    %v1054 = vrot.slane %v1020, 7
    %v1055 = vrot.slane %v1021, 7
    %v1056 = vrot.slane %v1022, 7
    %v1057 = vrot.slane %v1023, 7
    %v1058 = vrot.slane %v1024, 7
    %v1059 = vrot.slane %v1025, 7
    %v1060 = vrot.slane %v1026, 7
    %v1061 = vrot.slane %v1027, 7
    %v1062 = vrot.slane %v1028, 7
    %v1063 = vrot.slane %v1029, 7
    %v1064 = vrot.slane %v1030, 7
    %v1065 = vrot.slane %v1031, 7
    %vm1083 = vcmask 1040384
    %v1084 = vsel %vm1083, 0.0, %v1049
    %v1085 = vsel %vm1083, 0.0, %v1050
    %v1086 = vsel %vm1083, 0.0, %v1051
    %v1087 = vsel %vm1083, 0.0, %v1052
    %v1088 = vsel %vm1083, 0.0, %v1053
    %v1089 = vsel %vm1083, 0.0, %v1054
    %v1090 = vsel %vm1083, 0.0, %v1055
    %v1091 = vsel %vm1083, 0.0, %v1056
    %v1092 = vsel %vm1083, 0.0, %v1057
    %v1093 = vsel %vm1083, 0.0, %v1058
    %v1094 = vsel %vm1083, 0.0, %v1059
    %v1095 = vsel %vm1083, 0.0, %v1060
    %v1096 = vsel %vm1083, 0.0, %v1061
    %v1097 = vsel %vm1083, 0.0, %v1062
    %v1098 = vsel %vm1083, 0.0, %v1063
    %v1099 = vsel %vm1083, 0.0, %v1064
    %v1100 = vsel %vm1083, 0.0, %v1065
    %v1101 = vsel %vm1083, %v1049, 0.0
    %v1102 = vsel %vm1083, %v1050, 0.0
    %v1103 = vsel %vm1083, %v1051, 0.0
    %v1104 = vsel %vm1083, %v1052, 0.0
    %v1105 = vsel %vm1083, %v1053, 0.0
    %v1106 = vsel %vm1083, %v1054, 0.0
    %v1107 = vsel %vm1083, %v1055, 0.0
    %v1108 = vsel %vm1083, %v1056, 0.0
    %v1109 = vsel %vm1083, %v1057, 0.0
    %v1110 = vsel %vm1083, %v1058, 0.0
    %v1111 = vsel %vm1083, %v1059, 0.0
    %v1112 = vsel %vm1083, %v1060, 0.0
    %v1113 = vsel %vm1083, %v1061, 0.0
    %v1114 = vsel %vm1083, %v1062, 0.0
    %v1115 = vsel %vm1083, %v1063, 0.0
    %v1116 = vsel %vm1083, %v1064, 0.0
    %v1117 = vsel %vm1083, %v1065, 0.0
    %v1148 = vrot.slane %v1084, 1
    %v1149 = vrot.slane %v1101, 1
    %v1150 = vsel %vm162, %v1148, %v1149
    %v1151 = vrot.slane %v1085, 1
    %v1152 = vrot.slane %v1102, 1
    %v1153 = vsel %vm162, %v1151, %v1152
    %v1154 = vrot.slane %v1086, 1
    %v1155 = vrot.slane %v1103, 1
    %v1156 = vsel %vm162, %v1154, %v1155
    %v1157 = vrot.slane %v1087, 1
    %v1158 = vrot.slane %v1104, 1
    %v1159 = vsel %vm162, %v1157, %v1158
    %v1160 = vrot.slane %v1088, 1
    %v1161 = vrot.slane %v1105, 1
    %v1162 = vsel %vm162, %v1160, %v1161
    %v1163 = vrot.slane %v1089, 1
    %v1164 = vrot.slane %v1106, 1
    %v1165 = vsel %vm162, %v1163, %v1164
    %v1166 = vrot.slane %v1090, 1
    %v1167 = vrot.slane %v1107, 1
    %v1168 = vsel %vm162, %v1166, %v1167
    %v1169 = vrot.slane %v1091, 1
    %v1170 = vrot.slane %v1108, 1
    %v1171 = vsel %vm162, %v1169, %v1170
    %v1172 = vrot.slane %v1093, 1
    %v1173 = vrot.slane %v1110, 1
    %v1174 = vsel %vm162, %v1172, %v1173
    %v1175 = vrot.slane %v1094, 1
    %v1176 = vrot.slane %v1111, 1
    %v1177 = vsel %vm162, %v1175, %v1176
    %v1178 = vrot.slane %v1095, 1
    %v1179 = vrot.slane %v1112, 1
    %v1180 = vsel %vm162, %v1178, %v1179
    %v1181 = vrot.slane %v1096, 1
    %v1182 = vrot.slane %v1113, 1
    %v1183 = vsel %vm162, %v1181, %v1182
    %v1184 = vrot.slane %v1097, 1
    %v1185 = vrot.slane %v1114, 1
    %v1186 = vsel %vm162, %v1184, %v1185
    %v1187 = vrot.slane %v1098, 1
    %v1188 = vrot.slane %v1115, 1
    %v1189 = vsel %vm162, %v1187, %v1188
    %v1190 = vrot.slane %v1099, 1
    %v1191 = vrot.slane %v1116, 1
    %v1192 = vsel %vm162, %v1190, %v1191
    %vm1208 = vcmask 1045504
    %v1209 = vrot.slane %v1084, 2
    %v1210 = vrot.slane %v1101, 2
    %v1211 = vsel %vm1208, %v1209, %v1210
    %v1212 = vrot.slane %v1085, 2
    %v1213 = vrot.slane %v1102, 2
    %v1214 = vsel %vm1208, %v1212, %v1213
    %v1215 = vrot.slane %v1086, 2
    %v1216 = vrot.slane %v1103, 2
    %v1217 = vsel %vm1208, %v1215, %v1216
    %v1218 = vrot.slane %v1087, 2
    %v1219 = vrot.slane %v1104, 2
    %v1220 = vsel %vm1208, %v1218, %v1219
    %v1221 = vrot.slane %v1088, 2
    %v1222 = vrot.slane %v1105, 2
    %v1223 = vsel %vm1208, %v1221, %v1222
    %v1224 = vrot.slane %v1089, 2
    %v1225 = vrot.slane %v1106, 2
    %v1226 = vsel %vm1208, %v1224, %v1225
    %v1227 = vrot.slane %v1090, 2
    %v1228 = vrot.slane %v1107, 2
    %v1229 = vsel %vm1208, %v1227, %v1228
    %v1230 = vrot.slane %v1091, 2
    %v1231 = vrot.slane %v1108, 2
    %v1232 = vsel %vm1208, %v1230, %v1231
    %v1233 = vrot.slane %v1093, 2
    %v1234 = vrot.slane %v1110, 2
    %v1235 = vsel %vm1208, %v1233, %v1234
    %v1236 = vrot.slane %v1094, 2
    %v1237 = vrot.slane %v1111, 2
    %v1238 = vsel %vm1208, %v1236, %v1237
    %v1239 = vrot.slane %v1095, 2
    %v1240 = vrot.slane %v1112, 2
    %v1241 = vsel %vm1208, %v1239, %v1240
    %v1242 = vrot.slane %v1096, 2
    %v1243 = vrot.slane %v1113, 2
    %v1244 = vsel %vm1208, %v1242, %v1243
    %v1245 = vrot.slane %v1097, 2
    %v1246 = vrot.slane %v1114, 2
    %v1247 = vsel %vm1208, %v1245, %v1246
    %v1248 = vrot.slane %v1098, 2
    %v1249 = vrot.slane %v1115, 2
    %v1250 = vsel %vm1208, %v1248, %v1249
    %v1251 = vrot.slane %v1099, 2
    %v1252 = vrot.slane %v1116, 2
    %v1253 = vsel %vm1208, %v1251, %v1252
    %v1273 = vrot.slane %v1092, 1
    %v1274 = vrot.slane %v1109, 1
    %v1275 = vsel %vm162, %v1273, %v1274
    %v1276 = vrot.slane %v1100, 1
    %v1277 = vrot.slane %v1117, 1
    %v1278 = vsel %vm162, %v1276, %v1277
    %v1281 = vrot.slane %v1092, 2
    %v1282 = vrot.slane %v1109, 2
    %v1283 = vsel %vm1208, %v1281, %v1282
    %v1284 = vrot.slane %v1100, 2
    %v1285 = vrot.slane %v1117, 2
    %v1286 = vsel %vm1208, %v1284, %v1285
    %v1289 = vpack.c.bf16 %v1085, %v1084
    %v1290 = vpack.c.bf16 %v1153, %v1150
    %v1291 = vpack.c.bf16 %v1214, %v1211
    %v1292 = vpack.c.bf16 %v1086, %v1085
    %v1293 = vpack.c.bf16 %v1156, %v1153
    %v1294 = vpack.c.bf16 %v1217, %v1214
    %v1295 = vpack.c.bf16 %v1087, %v1086
    %v1296 = vpack.c.bf16 %v1159, %v1156
    %v1297 = vpack.c.bf16 %v1220, %v1217
    %v1298 = vpack.c.bf16 %v1088, %v1087
    %v1299 = vpack.c.bf16 %v1162, %v1159
    %v1300 = vpack.c.bf16 %v1223, %v1220
    %v1301 = vpack.c.bf16 %v1089, %v1088
    %v1302 = vpack.c.bf16 %v1165, %v1162
    %v1303 = vpack.c.bf16 %v1226, %v1223
    %v1304 = vpack.c.bf16 %v1090, %v1089
    %v1305 = vpack.c.bf16 %v1168, %v1165
    %v1306 = vpack.c.bf16 %v1229, %v1226
    %v1307 = vpack.c.bf16 %v1091, %v1090
    %v1308 = vpack.c.bf16 %v1171, %v1168
    %v1309 = vpack.c.bf16 %v1232, %v1229
    %v1310 = vpack.c.bf16 %v1092, %v1091
    %v1311 = vpack.c.bf16 %v1275, %v1171
    %v1312 = vpack.c.bf16 %v1283, %v1232
    %v1313 = vpack.c.bf16 %v1084, %v1092
    %v1314 = vpack.c.bf16 %v1150, %v1275
    %v1315 = vpack.c.bf16 %v1211, %v1283
    %v1316 = vpack.c.bf16 %v1093, %v1084
    %v1317 = vpack.c.bf16 %v1174, %v1150
    %v1318 = vpack.c.bf16 %v1235, %v1211
    %v1319 = vpack.c.bf16 %v1094, %v1093
    %v1320 = vpack.c.bf16 %v1177, %v1174
    %v1321 = vpack.c.bf16 %v1238, %v1235
    %v1322 = vpack.c.bf16 %v1095, %v1094
    %v1323 = vpack.c.bf16 %v1180, %v1177
    %v1324 = vpack.c.bf16 %v1241, %v1238
    %v1325 = vpack.c.bf16 %v1096, %v1095
    %v1326 = vpack.c.bf16 %v1183, %v1180
    %v1327 = vpack.c.bf16 %v1244, %v1241
    %v1328 = vpack.c.bf16 %v1097, %v1096
    %v1329 = vpack.c.bf16 %v1186, %v1183
    %v1330 = vpack.c.bf16 %v1247, %v1244
    %v1331 = vpack.c.bf16 %v1098, %v1097
    %v1332 = vpack.c.bf16 %v1189, %v1186
    %v1333 = vpack.c.bf16 %v1250, %v1247
    %v1334 = vpack.c.bf16 %v1099, %v1098
    %v1335 = vpack.c.bf16 %v1192, %v1189
    %v1336 = vpack.c.bf16 %v1253, %v1250
    %v1337 = vpack.c.bf16 %v1100, %v1099
    %v1338 = vpack.c.bf16 %v1278, %v1192
    %v1339 = vpack.c.bf16 %v1286, %v1253
    %v1340 = vpack.c.bf16 %v1084, %v1100
    %v1341 = vpack.c.bf16 %v1150, %v1278
    %v1342 = vpack.c.bf16 %v1211, %v1286
    %v1343 = vld [vmem:[%s3] sm:$0xf]
    %v1344 = vld [vmem:[%s3 + $0x4] sm:$0xf]
    %v1345 = vld [vmem:[%s3 + $0x8] sm:$0xf]
    %v1346 = vld [vmem:[%s3 + $0xc] sm:$0xf]
    %v1347 = vld [vmem:[%s3 + $0x10] sm:$0xf]
    %v1348 = vld [vmem:[%s3 + $0x14] sm:$0xf]
    %v1349 = vld [vmem:[%s3 + $0x18] sm:$0xf]
    %v1350 = vld [vmem:[%s3 + $0x1c] sm:$0xf]
    %v1351 = vld [vmem:[%s3 + $0x20] sm:$0xf]
    %v1352 = vld [vmem:[%s3 + $0x24] sm:$0xf]
    %v1353 = vld [vmem:[%s3 + $0x28] sm:$0xf]
    %v1354 = vld [vmem:[%s3 + $0x2c] sm:$0xf]
    %v1355 = vld [vmem:[%s3 + $0x30] sm:$0xf]
    %v1356 = vld [vmem:[%s3 + $0x34] sm:$0xf]
    %v1357 = vld [vmem:[%s3 + $0x38] sm:$0xf]
    %v1358 = vld [vmem:[%s3 + $0x3c] sm:$0xf]
    %v1359 = vld [vmem:[%s3 + $0x40] sm:$0xf]
    %v1360 = vld [vmem:[%s3 + $0x44] sm:$0xf]
    %v1361 = vld [vmem:[%s3 + $0x48] sm:$0xf]
    %v1362 = vld [vmem:[%s3 + $0x4c] sm:$0xf]
    %v1363 = vld [vmem:[%s3 + $0x50] sm:$0xf]
    %v1364 = vld [vmem:[%s3 + $0x54] sm:$0xf]
    %v1365 = vld [vmem:[%s3 + $0x58] sm:$0xf]
    %v1366 = vld [vmem:[%s3 + $0x5c] sm:$0xf]
    %v1367 = vld [vmem:[%s3 + $0x60] sm:$0xf]
    %v1368 = vld [vmem:[%s3 + $0x64] sm:$0xf]
    %v1369 = vld [vmem:[%s3 + $0x68] sm:$0xf]
    %v1370 = vld [vmem:[%s3 + $0x6c] sm:$0xf]
    %v1371 = vld [vmem:[%s3 + $0x70] sm:$0xf]
    %v1372 = vld [vmem:[%s3 + $0x74] sm:$0xf]
    %v1373 = vld [vmem:[%s3 + $0x78] sm:$0xf]
    %v1374 = vld [vmem:[%s3 + $0x7c] sm:$0xf]
    %v1375 = vld [vmem:[%s3 + $0x80] sm:$0xf]
    %v1376 = vld [vmem:[%s3 + $0x84] sm:$0xf]
    %v1377 = vld [vmem:[%s3 + $0x88] sm:$0xf]
    %v1378 = vld [vmem:[%s3 + $0x8c] sm:$0xf]
    %v1379 = vld [vmem:[%s3 + $0x90] sm:$0xf]
    %v1380 = vld [vmem:[%s3 + $0x94] sm:$0xf]
    %v1381 = vld [vmem:[%s3 + $0x98] sm:$0xf]
    %v1382 = vld [vmem:[%s3 + $0x9c] sm:$0xf]
    %v1383 = vld [vmem:[%s3 + $0xa0] sm:$0xf]
    %v1384 = vld [vmem:[%s3 + $0xa4] sm:$0xf]
    %v1385 = vld [vmem:[%s3 + $0xa8] sm:$0xf]
    %v1386 = vld [vmem:[%s3 + $0xac] sm:$0xf]
    %v1387 = vld [vmem:[%s3 + $0xb0] sm:$0xf]
    %v1388 = vld [vmem:[%s3 + $0xb4] sm:$0xf]
    %v1389 = vld [vmem:[%s3 + $0xb8] sm:$0xf]
    %v1390 = vld [vmem:[%s3 + $0xbc] sm:$0xf]
    %v1391 = vld [vmem:[%s3 + $0xc0] sm:$0xf]
    %v1392 = vld [vmem:[%s3 + $0xc4] sm:$0xf]
    %v1393 = vld [vmem:[%s3 + $0xc8] sm:$0xf]
    %v1394 = vld [vmem:[%s3 + $0xcc] sm:$0xf]
    %v1395 = vld [vmem:[%s3 + $0xd0] sm:$0xf]
    %v1396 = vld [vmem:[%s3 + $0xd4] sm:$0xf]
    %v1397 = vld [vmem:[%s3 + $0xd8] sm:$0xf]
    %v1398 = vld [vmem:[%s3 + $0xdc] sm:$0xf]
    %v1399 = vld [vmem:[%s3 + $0xe0] sm:$0xf]
    %v1400 = vld [vmem:[%s3 + $0xe4] sm:$0xf]
    %v1401 = vld [vmem:[%s3 + $0xe8] sm:$0xf]
    %v1402 = vld [vmem:[%s3 + $0xec] sm:$0xf]
    %v1403 = vld [vmem:[%s3 + $0xf0] sm:$0xf]
    %v1404 = vld [vmem:[%s3 + $0xf4] sm:$0xf]
    %v1405 = vld [vmem:[%s3 + $0xf8] sm:$0xf]
    %v1406 = vld [vmem:[%s3 + $0xfc] sm:$0xf]
    %v1407 = vld [vmem:[%s3 + $0x100] sm:$0xf]
    %v1408 = vld [vmem:[%s3 + $0x104] sm:$0xf]
    %v1409 = vld [vmem:[%s3 + $0x108] sm:$0xf]
    %v1410 = vld [vmem:[%s3 + $0x10c] sm:$0xf]
    %v1411 = vld [vmem:[%s3 + $0x110] sm:$0xf]
    %v1412 = vld [vmem:[%s3 + $0x114] sm:$0xf]
    %v1413 = vld [vmem:[%s3 + $0x118] sm:$0xf]
    %v1414 = vld [vmem:[%s3 + $0x11c] sm:$0xf]
    %v1415 = vld [vmem:[%s3 + $0x120] sm:$0xf]
    %v1416 = vld [vmem:[%s3 + $0x124] sm:$0xf]
    %v1417 = vld [vmem:[%s3 + $0x128] sm:$0xf]
    %v1418 = vld [vmem:[%s3 + $0x12c] sm:$0xf]
    %v1419 = vld [vmem:[%s3 + $0x130] sm:$0xf]
    %v1420 = vld [vmem:[%s3 + $0x134] sm:$0xf]
    %v1421 = vld [vmem:[%s3 + $0x138] sm:$0xf]
    %v1422 = vld [vmem:[%s3 + $0x13c] sm:$0xf]
    %v1423 = vld [vmem:[%s3 + $0x140] sm:$0xf]
    %v1424 = vld [vmem:[%s3 + $0x144] sm:$0xf]
    %v1425 = vld [vmem:[%s3 + $0x148] sm:$0xf]
    %v1426 = vld [vmem:[%s3 + $0x14c] sm:$0xf]
    %v1427 = vld [vmem:[%s3 + $0x150] sm:$0xf]
    %v1428 = vld [vmem:[%s3 + $0x154] sm:$0xf]
    %v1429 = vld [vmem:[%s3 + $0x158] sm:$0xf]
    %v1430 = vld [vmem:[%s3 + $0x15c] sm:$0xf]
    %v1431 = vld [vmem:[%s3 + $0x160] sm:$0xf]
    %v1432 = vld [vmem:[%s3 + $0x164] sm:$0xf]
    %v1433 = vld [vmem:[%s3 + $0x168] sm:$0xf]
    %v1434 = vld [vmem:[%s3 + $0x16c] sm:$0xf]
    %v1435 = vld [vmem:[%s3 + $0x170] sm:$0xf]
    %v1436 = vld [vmem:[%s3 + $0x174] sm:$0xf]
    %v1437 = vld [vmem:[%s3 + $0x178] sm:$0xf]
    %v1438 = vld [vmem:[%s3 + $0x17c] sm:$0xf]
    %v1439 = vld [vmem:[%s3 + $0x180] sm:$0xf]
    %v1440 = vld [vmem:[%s3 + $0x184] sm:$0xf]
    %v1441 = vld [vmem:[%s3 + $0x188] sm:$0xf]
    %v1442 = vld [vmem:[%s3 + $0x18c] sm:$0xf]
    %v1443 = vld [vmem:[%s3 + $0x190] sm:$0xf]
    %v1444 = vld [vmem:[%s3 + $0x194] sm:$0xf]
    %v1445 = vld [vmem:[%s3 + $0x198] sm:$0xf]
    %v1446 = vld [vmem:[%s3 + $0x19c] sm:$0xf]
    %v1447 = vld [vmem:[%s3 + $0x1a0] sm:$0xf]
    %v1448 = vld [vmem:[%s3 + $0x1a4] sm:$0xf]
    %v1449 = vld [vmem:[%s3 + $0x1a8] sm:$0xf]
    %v1450 = vld [vmem:[%s3 + $0x1ac] sm:$0xf]
    %v1451 = vld [vmem:[%s3 + $0x1b0] sm:$0xf]
    %v1452 = vld [vmem:[%s3 + $0x1b4] sm:$0xf]
    %v1453 = vld [vmem:[%s3 + $0x1b8] sm:$0xf]
    %v1454 = vld [vmem:[%s3 + $0x1bc] sm:$0xf]
    %v1455 = vld [vmem:[%s3 + $0x1c0] sm:$0xf]
    %v1456 = vld [vmem:[%s3 + $0x1c4] sm:$0xf]
    %v1457 = vld [vmem:[%s3 + $0x1c8] sm:$0xf]
    %v1458 = vld [vmem:[%s3 + $0x1cc] sm:$0xf]
    %v1459 = vld [vmem:[%s3 + $0x1d0] sm:$0xf]
    %v1460 = vld [vmem:[%s3 + $0x1d4] sm:$0xf]
    %v1461 = vld [vmem:[%s3 + $0x1d8] sm:$0xf]
    %v1462 = vld [vmem:[%s3 + $0x1dc] sm:$0xf]
    %v1463 = vld [vmem:[%s3 + $0x1e0] sm:$0xf]
    %v1464 = vld [vmem:[%s3 + $0x1e4] sm:$0xf]
    %v1465 = vld [vmem:[%s3 + $0x1e8] sm:$0xf]
    %v1466 = vld [vmem:[%s3 + $0x1ec] sm:$0xf]
    %v1467 = vld [vmem:[%s3 + $0x1f0] sm:$0xf]
    %v1468 = vld [vmem:[%s3 + $0x1f4] sm:$0xf]
    %v1469 = vld [vmem:[%s3 + $0x1f8] sm:$0xf]
    %v1470 = vld [vmem:[%s3 + $0x1fc] sm:$0xf]
    %v1471 = vld [vmem:[%s3 + $0x200] sm:$0xf]
    %v1472 = vld [vmem:[%s3 + $0x204] sm:$0xf]
    %v1473 = vld [vmem:[%s3 + $0x208] sm:$0xf]
    %v1474 = vld [vmem:[%s3 + $0x20c] sm:$0xf]
    %v1475 = vld [vmem:[%s3 + $0x210] sm:$0xf]
    %v1476 = vld [vmem:[%s3 + $0x214] sm:$0xf]
    %v1477 = vld [vmem:[%s3 + $0x218] sm:$0xf]
    %v1478 = vld [vmem:[%s3 + $0x21c] sm:$0xf]
    %v1479 = vld [vmem:[%s3 + $0x220] sm:$0xf]
    %v1480 = vld [vmem:[%s3 + $0x224] sm:$0xf]
    %v1481 = vld [vmem:[%s3 + $0x228] sm:$0xf]
    %v1482 = vld [vmem:[%s3 + $0x22c] sm:$0xf]
    %v1483 = vld [vmem:[%s3 + $0x230] sm:$0xf]
    %v1484 = vld [vmem:[%s3 + $0x234] sm:$0xf]
    %v1485 = vld [vmem:[%s3 + $0x238] sm:$0xf]
    %v1486 = vld [vmem:[%s3 + $0x23c] sm:$0xf]
    %v1487 = vld [vmem:[%s4] sm:$0x1]
    %v1489 = vlaneseq
    %v1490 = vshrl.u32 %v1489, 7
    %v1491 = vsub.s32 0, %v1490
    %v1492 = vrot.slane %v1487, %v1491
    %v1638 = vunpack.c.l.b16 %v1343
    %v1639 = vunpack.c.l.b16 %v1344
    %v1640 = vunpack.c.l.b16 %v1345
    %v1641 = vunpack.c.l.b16 %v1346
    %v1642 = vunpack.c.l.b16 %v1347
    %v1643 = vunpack.c.l.b16 %v1348
    %v1644 = vunpack.c.l.b16 %v1349
    %v1645 = vunpack.c.l.b16 %v1350
    %v1646 = vunpack.c.l.b16 %v1351
    %v1647 = vunpack.c.l.b16 %v1352
    %v1648 = vunpack.c.l.b16 %v1353
    %v1649 = vunpack.c.l.b16 %v1354
    %v1650 = vunpack.c.l.b16 %v1355
    %v1651 = vunpack.c.l.b16 %v1356
    %v1652 = vunpack.c.l.b16 %v1357
    %v1653 = vunpack.c.l.b16 %v1358
    %v1654 = vunpack.c.l.b16 %v1359
    %v1655 = vunpack.c.l.b16 %v1360
    %v1656 = vunpack.c.l.b16 %v1361
    %v1657 = vunpack.c.l.b16 %v1362
    %v1658 = vunpack.c.l.b16 %v1363
    %v1659 = vunpack.c.l.b16 %v1364
    %v1660 = vunpack.c.l.b16 %v1365
    %v1661 = vunpack.c.l.b16 %v1366
    %v1662 = vunpack.c.l.b16 %v1367
    %v1663 = vunpack.c.l.b16 %v1368
    %v1664 = vunpack.c.l.b16 %v1369
    %v1665 = vunpack.c.l.b16 %v1370
    %v1666 = vunpack.c.l.b16 %v1371
    %v1667 = vunpack.c.l.b16 %v1372
    %v1668 = vunpack.c.l.b16 %v1373
    %v1669 = vunpack.c.l.b16 %v1374
    %v1670 = vunpack.c.l.b16 %v1375
    %v1671 = vunpack.c.l.b16 %v1376
    %v1672 = vunpack.c.l.b16 %v1377
    %v1673 = vunpack.c.l.b16 %v1378
    %v1674 = vunpack.c.l.b16 %v1379
    %v1675 = vunpack.c.l.b16 %v1380
    %v1676 = vunpack.c.l.b16 %v1381
    %v1677 = vunpack.c.l.b16 %v1382
    %v1678 = vunpack.c.l.b16 %v1383
    %v1679 = vunpack.c.l.b16 %v1384
    %v1680 = vunpack.c.l.b16 %v1385
    %v1681 = vunpack.c.l.b16 %v1386
    %v1682 = vunpack.c.l.b16 %v1387
    %v1683 = vunpack.c.l.b16 %v1388
    %v1684 = vunpack.c.l.b16 %v1389
    %v1685 = vunpack.c.l.b16 %v1390
    %v1686 = vunpack.c.l.b16 %v1391
    %v1687 = vunpack.c.l.b16 %v1392
    %v1688 = vunpack.c.l.b16 %v1393
    %v1689 = vunpack.c.l.b16 %v1394
    %v1690 = vunpack.c.l.b16 %v1395
    %v1691 = vunpack.c.l.b16 %v1396
    %v1692 = vunpack.c.l.b16 %v1397
    %v1693 = vunpack.c.l.b16 %v1398
    %v1694 = vunpack.c.l.b16 %v1399
    %v1695 = vunpack.c.l.b16 %v1400
    %v1696 = vunpack.c.l.b16 %v1401
    %v1697 = vunpack.c.l.b16 %v1402
    %v1698 = vunpack.c.l.b16 %v1403
    %v1699 = vunpack.c.l.b16 %v1404
    %v1700 = vunpack.c.l.b16 %v1405
    %v1701 = vunpack.c.l.b16 %v1406
    %v1702 = vunpack.c.l.b16 %v1407
    %v1703 = vunpack.c.l.b16 %v1408
    %v1704 = vunpack.c.l.b16 %v1409
    %v1705 = vunpack.c.l.b16 %v1410
    %v1706 = vunpack.c.l.b16 %v1411
    %v1707 = vunpack.c.l.b16 %v1412
    %v1708 = vunpack.c.l.b16 %v1413
    %v1709 = vunpack.c.l.b16 %v1414
    %v1710 = vunpack.c.l.b16 %v1415
    %v1711 = vunpack.c.l.b16 %v1416
    %v1712 = vunpack.c.l.b16 %v1417
    %v1713 = vunpack.c.l.b16 %v1418
    %v1714 = vunpack.c.l.b16 %v1419
    %v1715 = vunpack.c.l.b16 %v1420
    %v1716 = vunpack.c.l.b16 %v1421
    %v1717 = vunpack.c.l.b16 %v1422
    %v1718 = vunpack.c.l.b16 %v1423
    %v1719 = vunpack.c.l.b16 %v1424
    %v1720 = vunpack.c.l.b16 %v1425
    %v1721 = vunpack.c.l.b16 %v1426
    %v1722 = vunpack.c.l.b16 %v1427
    %v1723 = vunpack.c.l.b16 %v1428
    %v1724 = vunpack.c.l.b16 %v1429
    %v1725 = vunpack.c.l.b16 %v1430
    %v1726 = vunpack.c.l.b16 %v1431
    %v1727 = vunpack.c.l.b16 %v1432
    %v1728 = vunpack.c.l.b16 %v1433
    %v1729 = vunpack.c.l.b16 %v1434
    %v1730 = vunpack.c.l.b16 %v1435
    %v1731 = vunpack.c.l.b16 %v1436
    %v1732 = vunpack.c.l.b16 %v1437
    %v1733 = vunpack.c.l.b16 %v1438
    %v1734 = vunpack.c.l.b16 %v1439
    %v1735 = vunpack.c.l.b16 %v1440
    %v1736 = vunpack.c.l.b16 %v1441
    %v1737 = vunpack.c.l.b16 %v1442
    %v1738 = vunpack.c.l.b16 %v1443
    %v1739 = vunpack.c.l.b16 %v1444
    %v1740 = vunpack.c.l.b16 %v1445
    %v1741 = vunpack.c.l.b16 %v1446
    %v1742 = vunpack.c.l.b16 %v1447
    %v1743 = vunpack.c.l.b16 %v1448
    %v1744 = vunpack.c.l.b16 %v1449
    %v1745 = vunpack.c.l.b16 %v1450
    %v1746 = vunpack.c.l.b16 %v1451
    %v1747 = vunpack.c.l.b16 %v1452
    %v1748 = vunpack.c.l.b16 %v1453
    %v1749 = vunpack.c.l.b16 %v1454
    %v1750 = vunpack.c.l.b16 %v1455
    %v1751 = vunpack.c.l.b16 %v1456
    %v1752 = vunpack.c.l.b16 %v1457
    %v1753 = vunpack.c.l.b16 %v1458
    %v1754 = vunpack.c.l.b16 %v1459
    %v1755 = vunpack.c.l.b16 %v1460
    %v1756 = vunpack.c.l.b16 %v1461
    %v1757 = vunpack.c.l.b16 %v1462
    %v1758 = vunpack.c.l.b16 %v1463
    %v1759 = vunpack.c.l.b16 %v1464
    %v1760 = vunpack.c.l.b16 %v1465
    %v1761 = vunpack.c.l.b16 %v1466
    %v1762 = vunpack.c.l.b16 %v1467
    %v1763 = vunpack.c.l.b16 %v1468
    %v1764 = vunpack.c.l.b16 %v1469
    %v1765 = vunpack.c.l.b16 %v1470
    %v1766 = vunpack.c.l.b16 %v1471
    %v1767 = vunpack.c.l.b16 %v1472
    %v1768 = vunpack.c.l.b16 %v1473
    %v1769 = vunpack.c.l.b16 %v1474
    %v1770 = vunpack.c.l.b16 %v1475
    %v1771 = vunpack.c.l.b16 %v1476
    %v1772 = vunpack.c.l.b16 %v1477
    %v1773 = vunpack.c.l.b16 %v1478
    %v1774 = vunpack.c.l.b16 %v1479
    %v1775 = vunpack.c.l.b16 %v1480
    %v1776 = vunpack.c.l.b16 %v1481
    %v1777 = vunpack.c.l.b16 %v1482
    %v1778 = vunpack.c.l.b16 %v1483
    %v1779 = vunpack.c.l.b16 %v1484
    %v1780 = vunpack.c.l.b16 %v1485
    %v1781 = vunpack.c.l.b16 %v1486
    %v1782 = vpack.c.b16 %v1639, %v1638
    %v1783 = vpack.c.b16 %v1641, %v1640
    %v1784 = vpack.c.b16 %v1643, %v1642
    %v1785 = vpack.c.b16 %v1645, %v1644
    %v1786 = vpack.c.b16 %v1647, %v1646
    %v1787 = vpack.c.b16 %v1649, %v1648
    %v1788 = vpack.c.b16 %v1651, %v1650
    %v1789 = vpack.c.b16 %v1653, %v1652
    %v1790 = vpack.c.b16 %v1655, %v1654
    %v1791 = vpack.c.b16 %v1657, %v1656
    %v1792 = vpack.c.b16 %v1659, %v1658
    %v1793 = vpack.c.b16 %v1661, %v1660
    %v1794 = vpack.c.b16 %v1663, %v1662
    %v1795 = vpack.c.b16 %v1665, %v1664
    %v1796 = vpack.c.b16 %v1667, %v1666
    %v1797 = vpack.c.b16 %v1669, %v1668
    %v1798 = vpack.c.b16 %v1671, %v1670
    %v1799 = vpack.c.b16 %v1673, %v1672
    %v1800 = vpack.c.b16 %v1675, %v1674
    %v1801 = vpack.c.b16 %v1677, %v1676
    %v1802 = vpack.c.b16 %v1679, %v1678
    %v1803 = vpack.c.b16 %v1681, %v1680
    %v1804 = vpack.c.b16 %v1683, %v1682
    %v1805 = vpack.c.b16 %v1685, %v1684
    %v1806 = vpack.c.b16 %v1687, %v1686
    %v1807 = vpack.c.b16 %v1689, %v1688
    %v1808 = vpack.c.b16 %v1691, %v1690
    %v1809 = vpack.c.b16 %v1693, %v1692
    %v1810 = vpack.c.b16 %v1695, %v1694
    %v1811 = vpack.c.b16 %v1697, %v1696
    %v1812 = vpack.c.b16 %v1699, %v1698
    %v1813 = vpack.c.b16 %v1701, %v1700
    %v1814 = vpack.c.b16 %v1703, %v1702
    %v1815 = vpack.c.b16 %v1705, %v1704
    %v1816 = vpack.c.b16 %v1707, %v1706
    %v1817 = vpack.c.b16 %v1709, %v1708
    %v1818 = vpack.c.b16 %v1711, %v1710
    %v1819 = vpack.c.b16 %v1713, %v1712
    %v1820 = vpack.c.b16 %v1715, %v1714
    %v1821 = vpack.c.b16 %v1717, %v1716
    %v1822 = vpack.c.b16 %v1719, %v1718
    %v1823 = vpack.c.b16 %v1721, %v1720
    %v1824 = vpack.c.b16 %v1723, %v1722
    %v1825 = vpack.c.b16 %v1725, %v1724
    %v1826 = vpack.c.b16 %v1727, %v1726
    %v1827 = vpack.c.b16 %v1729, %v1728
    %v1828 = vpack.c.b16 %v1731, %v1730
    %v1829 = vpack.c.b16 %v1733, %v1732
    %v1830 = vpack.c.b16 %v1735, %v1734
    %v1831 = vpack.c.b16 %v1737, %v1736
    %v1832 = vpack.c.b16 %v1739, %v1738
    %v1833 = vpack.c.b16 %v1741, %v1740
    %v1834 = vpack.c.b16 %v1743, %v1742
    %v1835 = vpack.c.b16 %v1745, %v1744
    %v1836 = vpack.c.b16 %v1747, %v1746
    %v1837 = vpack.c.b16 %v1749, %v1748
    %v1838 = vpack.c.b16 %v1751, %v1750
    %v1839 = vpack.c.b16 %v1753, %v1752
    %v1840 = vpack.c.b16 %v1755, %v1754
    %v1841 = vpack.c.b16 %v1757, %v1756
    %v1842 = vpack.c.b16 %v1759, %v1758
    %v1843 = vpack.c.b16 %v1761, %v1760
    %v1844 = vpack.c.b16 %v1763, %v1762
    %v1845 = vpack.c.b16 %v1765, %v1764
    %v1846 = vpack.c.b16 %v1767, %v1766
    %v1847 = vpack.c.b16 %v1769, %v1768
    %v1848 = vpack.c.b16 %v1771, %v1770
    %v1849 = vpack.c.b16 %v1773, %v1772
    %v1850 = vpack.c.b16 %v1775, %v1774
    %v1851 = vpack.c.b16 %v1777, %v1776
    %v1852 = vpack.c.b16 %v1779, %v1778
    %v1853 = vpack.c.b16 %v1781, %v1780
    %1926 = vmatprep.subr.bf16.mxu0 0
    %1927 = vmatpush1.bf16.msra.mxu0 %v1782
    %1928 = vmatprep.subr.bf16.mxu0 0
    %1929 = vmatpush1.bf16.msra.mxu0 %v1783
    %1930 = vmatprep.subr.bf16.mxu0 0
    %1931 = vmatpush1.bf16.msra.mxu0 %v1784
    %1932 = vmatprep.subr.bf16.mxu0 0
    %1933 = vmatpush1.bf16.msra.mxu0 %v1785
    %1934 = vmatprep.subr.bf16.mxu0 0
    %1935 = vmatpush1.bf16.msra.mxu0 %v1786
    %1936 = vmatprep.subr.bf16.mxu0 0
    %1937 = vmatpush1.bf16.msra.mxu0 %v1787
    %1938 = vmatprep.subr.bf16.mxu0 0
    %1939 = vmatpush1.bf16.msra.mxu0 %v1788
    %1940 = vmatprep.subr.bf16.mxu0 0
    %1941 = vmatpush1.bf16.msra.mxu0 %v1789
    %1942 = vmatprep.subr.bf16.mxu0 0
    %1943 = vmatpush1.bf16.msra.mxu0 %v1790
    %1944 = vmatprep.subr.bf16.mxu0 0
    %1945 = vmatpush1.bf16.msra.mxu0 %v1791
    %1946 = vmatprep.subr.bf16.mxu0 0
    %1947 = vmatpush1.bf16.msra.mxu0 %v1792
    %1948 = vmatprep.subr.bf16.mxu0 0
    %1949 = vmatpush1.bf16.msra.mxu0 %v1793
    %1950 = vmatprep.subr.bf16.mxu0 0
    %1951 = vmatpush1.bf16.msra.mxu0 %v1794
    %1952 = vmatprep.subr.bf16.mxu0 0
    %1953 = vmatpush1.bf16.msra.mxu0 %v1795
    %1954 = vmatprep.subr.bf16.mxu0 0
    %1955 = vmatpush1.bf16.msra.mxu0 %v1796
    %1956 = vmatprep.subr.bf16.mxu0 0
    %1957 = vmatpush1.bf16.msra.mxu0 %v1797
    %1958 = vmatprep.mubr.bf16.mxu0 %v1290
    %1959 = vmatmul.mubr.bf16.gmra.mrb[0].mxu0 %v1289
    %v1960 = vpop.f32.mrb[0].mxu0
    %v1961 = vadd.f32 %v1492, %v1960
    %v1962 = vpop.f32.mrb[0].mxu0
    %v1963 = vpop.f32.mrb[0].mxu0
    %v1964 = vadd.f32 %v1492, %v1963
    %v1965 = vpop.f32.mrb[0].mxu0
    %1966 = vmatprep.mubr.bf16.mxu0 %v1296
    %1967 = vmatmul.mubr.bf16.gmra.mrb[0].mxu0 %v1295
    %v1968 = vpop.f32.mrb[0].mxu0
    %v1969 = vadd.f32 %v1492, %v1968
    %v1970 = vpop.f32.mrb[0].mxu0
    %v1971 = vpop.f32.mrb[0].mxu0
    %v1972 = vadd.f32 %v1492, %v1971
    %v1973 = vpop.f32.mrb[0].mxu0
    %1974 = vmatprep.mubr.bf16.mxu0 %v1302
    %1975 = vmatmul.mubr.bf16.gmra.mrb[0].mxu0 %v1301
    %v1976 = vpop.f32.mrb[0].mxu0
    %v1977 = vadd.f32 %v1492, %v1976
    %v1978 = vpop.f32.mrb[0].mxu0
    %v1979 = vpop.f32.mrb[0].mxu0
    %v1980 = vadd.f32 %v1492, %v1979
    %v1981 = vpop.f32.mrb[0].mxu0
    %1982 = vmatprep.mubr.bf16.mxu0 %v1308
    %1983 = vmatmul.mubr.bf16.gmra.mrb[0].mxu0 %v1307
    %v1984 = vpop.f32.mrb[0].mxu0
    %v1985 = vadd.f32 %v1492, %v1984
    %v1986 = vpop.f32.mrb[0].mxu0
    %v1987 = vpop.f32.mrb[0].mxu0
    %v1988 = vadd.f32 %v1492, %v1987
    %v1989 = vpop.f32.mrb[0].mxu0
    %1990 = vmatprep.mubr.bf16.mxu0 %v1317
    %1991 = vmatmul.mubr.bf16.gmra.mrb[0].mxu0 %v1316
    %v1992 = vpop.f32.mrb[0].mxu0
    %v1993 = vadd.f32 %v1492, %v1992
    %v1994 = vpop.f32.mrb[0].mxu0
    %v1995 = vpop.f32.mrb[0].mxu0
    %v1996 = vadd.f32 %v1492, %v1995
    %v1997 = vpop.f32.mrb[0].mxu0
    %1998 = vmatprep.mubr.bf16.mxu0 %v1323
    %1999 = vmatmul.mubr.bf16.gmra.mrb[0].mxu0 %v1322
    %v2000 = vpop.f32.mrb[0].mxu0
    %v2001 = vadd.f32 %v1492, %v2000
    %v2002 = vpop.f32.mrb[0].mxu0
    %v2003 = vpop.f32.mrb[0].mxu0
    %v2004 = vadd.f32 %v1492, %v2003
    %v2005 = vpop.f32.mrb[0].mxu0
    %2006 = vmatprep.mubr.bf16.mxu0 %v1329
    %2007 = vmatmul.mubr.bf16.gmra.mrb[0].mxu0 %v1328
    %v2008 = vpop.f32.mrb[0].mxu0
    %v2009 = vadd.f32 %v1492, %v2008
    %v2010 = vpop.f32.mrb[0].mxu0
    %v2011 = vpop.f32.mrb[0].mxu0
    %v2012 = vadd.f32 %v1492, %v2011
    %v2013 = vpop.f32.mrb[0].mxu0
    %2014 = vmatprep.mubr.bf16.mxu0 %v1335
    %2015 = vmatmul.mubr.bf16.gmra.mrb[0].mxu0 %v1334
    %v2016 = vpop.f32.mrb[0].mxu0
    %v2017 = vadd.f32 %v1492, %v2016
    %v2018 = vpop.f32.mrb[0].mxu0
    %v2019 = vpop.f32.mrb[0].mxu0
    %v2020 = vadd.f32 %v1492, %v2019
    %v2021 = vpop.f32.mrb[0].mxu0
    %2022 = vdwg.mxu0
    %2023 = vmatprep.subr.bf16.mxu0 0
    %2024 = vmatpush1.bf16.msra.mxu0 %v1798
    %2025 = vmatprep.subr.bf16.mxu0 0
    %2026 = vmatpush1.bf16.msra.mxu0 %v1799
    %2027 = vmatprep.subr.bf16.mxu0 0
    %2028 = vmatpush1.bf16.msra.mxu0 %v1800
    %2029 = vmatprep.subr.bf16.mxu0 0
    %2030 = vmatpush1.bf16.msra.mxu0 %v1801
    %2031 = vmatprep.subr.bf16.mxu0 0
    %2032 = vmatpush1.bf16.msra.mxu0 %v1802
    %2033 = vmatprep.subr.bf16.mxu0 0
    %2034 = vmatpush1.bf16.msra.mxu0 %v1803
    %2035 = vmatprep.subr.bf16.mxu0 0
    %2036 = vmatpush1.bf16.msra.mxu0 %v1804
    %2037 = vmatprep.subr.bf16.mxu0 0
    %2038 = vmatpush1.bf16.msra.mxu0 %v1805
    %2039 = vmatprep.subr.bf16.mxu0 0
    %2040 = vmatpush1.bf16.msra.mxu0 %v1806
    %2041 = vmatprep.subr.bf16.mxu0 0
    %2042 = vmatpush1.bf16.msra.mxu0 %v1807
    %2043 = vmatprep.subr.bf16.mxu0 0
    %2044 = vmatpush1.bf16.msra.mxu0 %v1808
    %2045 = vmatprep.subr.bf16.mxu0 0
    %2046 = vmatpush1.bf16.msra.mxu0 %v1809
    %2047 = vmatprep.subr.bf16.mxu0 0
    %2048 = vmatpush1.bf16.msra.mxu0 %v1810
    %2049 = vmatprep.subr.bf16.mxu0 0
    %2050 = vmatpush1.bf16.msra.mxu0 %v1811
    %2051 = vmatprep.subr.bf16.mxu0 0
    %2052 = vmatpush1.bf16.msra.mxu0 %v1812
    %2053 = vmatprep.subr.bf16.mxu0 0
    %2054 = vmatpush1.bf16.msra.mxu0 %v1813
    %2055 = vmatprep.mubr.bf16.mxu0 %v1292
    %2056 = vmatmul.mubr.bf16.gmra.mrb[0].mxu0 %v1291
    %v2057 = vpop.f32.mrb[0].mxu0
    %v2058 = vadd.f32 %v1961, %v2057
    %v2059 = vpop.f32.mrb[0].mxu0
    %v2060 = vpop.f32.mrb[0].mxu0
    %v2061 = vadd.f32 %v1964, %v2060
    %v2062 = vpop.f32.mrb[0].mxu0
    %2063 = vmatprep.mubr.bf16.mxu0 %v1298
    %2064 = vmatmul.mubr.bf16.gmra.mrb[0].mxu0 %v1297
    %v2065 = vpop.f32.mrb[0].mxu0
    %v2066 = vadd.f32 %v1969, %v2065
    %v2067 = vpop.f32.mrb[0].mxu0
    %v2068 = vpop.f32.mrb[0].mxu0
    %v2069 = vadd.f32 %v1972, %v2068
    %v2070 = vpop.f32.mrb[0].mxu0
    %2071 = vmatprep.mubr.bf16.mxu0 %v1304
    %2072 = vmatmul.mubr.bf16.gmra.mrb[0].mxu0 %v1303
    %v2073 = vpop.f32.mrb[0].mxu0
    %v2074 = vadd.f32 %v1977, %v2073
    %v2075 = vpop.f32.mrb[0].mxu0
    %v2076 = vpop.f32.mrb[0].mxu0
    %v2077 = vadd.f32 %v1980, %v2076
    %v2078 = vpop.f32.mrb[0].mxu0
    %2079 = vmatprep.mubr.bf16.mxu0 %v1310
    %2080 = vmatmul.mubr.bf16.gmra.mrb[0].mxu0 %v1309
    %v2081 = vpop.f32.mrb[0].mxu0
    %v2082 = vadd.f32 %v1985, %v2081
    %v2083 = vpop.f32.mrb[0].mxu0
    %v2084 = vpop.f32.mrb[0].mxu0
    %v2085 = vadd.f32 %v1988, %v2084
    %v2086 = vpop.f32.mrb[0].mxu0
    %2087 = vmatprep.mubr.bf16.mxu0 %v1319
    %2088 = vmatmul.mubr.bf16.gmra.mrb[0].mxu0 %v1318
    %v2089 = vpop.f32.mrb[0].mxu0
    %v2090 = vadd.f32 %v1993, %v2089
    %v2091 = vpop.f32.mrb[0].mxu0
    %v2092 = vpop.f32.mrb[0].mxu0
    %v2093 = vadd.f32 %v1996, %v2092
    %v2094 = vpop.f32.mrb[0].mxu0
    %2095 = vmatprep.mubr.bf16.mxu0 %v1325
    %2096 = vmatmul.mubr.bf16.gmra.mrb[0].mxu0 %v1324
    %v2097 = vpop.f32.mrb[0].mxu0
    %v2098 = vadd.f32 %v2001, %v2097
    %v2099 = vpop.f32.mrb[0].mxu0
    %v2100 = vpop.f32.mrb[0].mxu0
    %v2101 = vadd.f32 %v2004, %v2100
    %v2102 = vpop.f32.mrb[0].mxu0
    %2103 = vmatprep.mubr.bf16.mxu0 %v1331
    %2104 = vmatmul.mubr.bf16.gmra.mrb[0].mxu0 %v1330
    %v2105 = vpop.f32.mrb[0].mxu0
    %v2106 = vadd.f32 %v2009, %v2105
    %v2107 = vpop.f32.mrb[0].mxu0
    %v2108 = vpop.f32.mrb[0].mxu0
    %v2109 = vadd.f32 %v2012, %v2108
    %v2110 = vpop.f32.mrb[0].mxu0
    %2111 = vmatprep.mubr.bf16.mxu0 %v1337
    %2112 = vmatmul.mubr.bf16.gmra.mrb[0].mxu0 %v1336
    %v2113 = vpop.f32.mrb[0].mxu0
    %v2114 = vadd.f32 %v2017, %v2113
    %v2115 = vpop.f32.mrb[0].mxu0
    %v2116 = vpop.f32.mrb[0].mxu0
    %v2117 = vadd.f32 %v2020, %v2116
    %v2118 = vpop.f32.mrb[0].mxu0
    %2119 = vdwg.mxu0
    %2120 = vmatprep.subr.bf16.mxu0 0
    %2121 = vmatpush1.bf16.msra.mxu0 %v1814
    %2122 = vmatprep.subr.bf16.mxu0 0
    %2123 = vmatpush1.bf16.msra.mxu0 %v1815
    %2124 = vmatprep.subr.bf16.mxu0 0
    %2125 = vmatpush1.bf16.msra.mxu0 %v1816
    %2126 = vmatprep.subr.bf16.mxu0 0
    %2127 = vmatpush1.bf16.msra.mxu0 %v1817
    %2128 = vmatprep.subr.bf16.mxu0 0
    %2129 = vmatpush1.bf16.msra.mxu0 %v1818
    %2130 = vmatprep.subr.bf16.mxu0 0
    %2131 = vmatpush1.bf16.msra.mxu0 %v1819
    %2132 = vmatprep.subr.bf16.mxu0 0
    %2133 = vmatpush1.bf16.msra.mxu0 %v1820
    %2134 = vmatprep.subr.bf16.mxu0 0
    %2135 = vmatpush1.bf16.msra.mxu0 %v1821
    %2136 = vmatprep.subr.bf16.mxu0 0
    %2137 = vmatpush1.bf16.msra.mxu0 %v1822
    %2138 = vmatprep.subr.bf16.mxu0 0
    %2139 = vmatpush1.bf16.msra.mxu0 %v1823
    %2140 = vmatprep.subr.bf16.mxu0 0
    %2141 = vmatpush1.bf16.msra.mxu0 %v1824
    %2142 = vmatprep.subr.bf16.mxu0 0
    %2143 = vmatpush1.bf16.msra.mxu0 %v1825
    %2144 = vmatprep.subr.bf16.mxu0 0
    %2145 = vmatpush1.bf16.msra.mxu0 %v1826
    %2146 = vmatprep.subr.bf16.mxu0 0
    %2147 = vmatpush1.bf16.msra.mxu0 %v1827
    %2148 = vmatprep.subr.bf16.mxu0 0
    %2149 = vmatpush1.bf16.msra.mxu0 %v1828
    %2150 = vmatprep.subr.bf16.mxu0 0
    %2151 = vmatpush1.bf16.msra.mxu0 %v1829
    %2152 = vmatprep.mubr.bf16.mxu0 %v1294
    %2153 = vmatmul.mubr.bf16.gmra.mrb[0].mxu0 %v1293
    %v2154 = vpop.f32.mrb[0].mxu0
    %v2155 = vadd.f32 %v2058, %v2154
    %v2156 = vpop.f32.mrb[0].mxu0
    %v2157 = vpop.f32.mrb[0].mxu0
    %v2158 = vadd.f32 %v2061, %v2157
    %v2159 = vpop.f32.mrb[0].mxu0
    %2160 = vmatprep.mubr.bf16.mxu0 %v1300
    %2161 = vmatmul.mubr.bf16.gmra.mrb[0].mxu0 %v1299
    %v2162 = vpop.f32.mrb[0].mxu0
    %v2163 = vadd.f32 %v2066, %v2162
    %v2164 = vpop.f32.mrb[0].mxu0
    %v2165 = vpop.f32.mrb[0].mxu0
    %v2166 = vadd.f32 %v2069, %v2165
    %v2167 = vpop.f32.mrb[0].mxu0
    %2168 = vmatprep.mubr.bf16.mxu0 %v1306
    %2169 = vmatmul.mubr.bf16.gmra.mrb[0].mxu0 %v1305
    %v2170 = vpop.f32.mrb[0].mxu0
    %v2171 = vadd.f32 %v2074, %v2170
    %v2172 = vpop.f32.mrb[0].mxu0
    %v2173 = vpop.f32.mrb[0].mxu0
    %v2174 = vadd.f32 %v2077, %v2173
    %v2175 = vpop.f32.mrb[0].mxu0
    %2176 = vmatprep.mubr.bf16.mxu0 %v1312
    %2177 = vmatmul.mubr.bf16.gmra.mrb[0].mxu0 %v1311
    %v2178 = vpop.f32.mrb[0].mxu0
    %v2179 = vadd.f32 %v2082, %v2178
    %v2180 = vpop.f32.mrb[0].mxu0
    %v2181 = vpop.f32.mrb[0].mxu0
    %v2182 = vadd.f32 %v2085, %v2181
    %v2183 = vpop.f32.mrb[0].mxu0
    %2184 = vmatprep.mubr.bf16.mxu0 %v1321
    %2185 = vmatmul.mubr.bf16.gmra.mrb[0].mxu0 %v1320
    %v2186 = vpop.f32.mrb[0].mxu0
    %v2187 = vadd.f32 %v2090, %v2186
    %v2188 = vpop.f32.mrb[0].mxu0
    %v2189 = vpop.f32.mrb[0].mxu0
    %v2190 = vadd.f32 %v2093, %v2189
    %v2191 = vpop.f32.mrb[0].mxu0
    %2192 = vmatprep.mubr.bf16.mxu0 %v1327
    %2193 = vmatmul.mubr.bf16.gmra.mrb[0].mxu0 %v1326
    %v2194 = vpop.f32.mrb[0].mxu0
    %v2195 = vadd.f32 %v2098, %v2194
    %v2196 = vpop.f32.mrb[0].mxu0
    %v2197 = vpop.f32.mrb[0].mxu0
    %v2198 = vadd.f32 %v2101, %v2197
    %v2199 = vpop.f32.mrb[0].mxu0
    %2200 = vmatprep.mubr.bf16.mxu0 %v1333
    %2201 = vmatmul.mubr.bf16.gmra.mrb[0].mxu0 %v1332
    %v2202 = vpop.f32.mrb[0].mxu0
    %v2203 = vadd.f32 %v2106, %v2202
    %v2204 = vpop.f32.mrb[0].mxu0
    %v2205 = vpop.f32.mrb[0].mxu0
    %v2206 = vadd.f32 %v2109, %v2205
    %v2207 = vpop.f32.mrb[0].mxu0
    %2208 = vmatprep.mubr.bf16.mxu0 %v1339
    %2209 = vmatmul.mubr.bf16.gmra.mrb[0].mxu0 %v1338
    %v2210 = vpop.f32.mrb[0].mxu0
    %v2211 = vadd.f32 %v2114, %v2210
    %v2212 = vpop.f32.mrb[0].mxu0
    %v2213 = vpop.f32.mrb[0].mxu0
    %v2214 = vadd.f32 %v2117, %v2213
    %v2215 = vpop.f32.mrb[0].mxu0
    %2216 = vdwg.mxu0
    %2217 = vmatprep.subr.bf16.mxu0 0
    %2218 = vmatpush1.bf16.msra.mxu0 %v1830
    %2219 = vmatprep.subr.bf16.mxu0 0
    %2220 = vmatpush1.bf16.msra.mxu0 %v1831
    %2221 = vmatprep.subr.bf16.mxu0 0
    %2222 = vmatpush1.bf16.msra.mxu0 %v1832
    %2223 = vmatprep.subr.bf16.mxu0 0
    %2224 = vmatpush1.bf16.msra.mxu0 %v1833
    %2225 = vmatprep.subr.bf16.mxu0 0
    %2226 = vmatpush1.bf16.msra.mxu0 %v1834
    %2227 = vmatprep.subr.bf16.mxu0 0
    %2228 = vmatpush1.bf16.msra.mxu0 %v1835
    %2229 = vmatprep.subr.bf16.mxu0 0
    %2230 = vmatpush1.bf16.msra.mxu0 %v1836
    %2231 = vmatprep.subr.bf16.mxu0 0
    %2232 = vmatpush1.bf16.msra.mxu0 %v1837
    %2233 = vmatprep.subr.bf16.mxu0 0
    %2234 = vmatpush1.bf16.msra.mxu0 %v1838
    %2235 = vmatprep.subr.bf16.mxu0 0
    %2236 = vmatpush1.bf16.msra.mxu0 %v1839
    %2237 = vmatprep.subr.bf16.mxu0 0
    %2238 = vmatpush1.bf16.msra.mxu0 %v1840
    %2239 = vmatprep.subr.bf16.mxu0 0
    %2240 = vmatpush1.bf16.msra.mxu0 %v1841
    %2241 = vmatprep.subr.bf16.mxu0 0
    %2242 = vmatpush1.bf16.msra.mxu0 %v1842
    %2243 = vmatprep.subr.bf16.mxu0 0
    %2244 = vmatpush1.bf16.msra.mxu0 %v1843
    %2245 = vmatprep.subr.bf16.mxu0 0
    %2246 = vmatpush1.bf16.msra.mxu0 %v1844
    %2247 = vmatprep.subr.bf16.mxu0 0
    %2248 = vmatpush1.bf16.msra.mxu0 %v1845
    %2249 = vmatprep.mubr.bf16.mxu0 %v1296
    %2250 = vmatmul.mubr.bf16.gmra.mrb[0].mxu0 %v1295
    %v2251 = vpop.f32.mrb[0].mxu0
    %v2252 = vadd.f32 %v2155, %v2251
    %v2253 = vpop.f32.mrb[0].mxu0
    %v2254 = vpop.f32.mrb[0].mxu0
    %v2255 = vadd.f32 %v2158, %v2254
    %v2256 = vpop.f32.mrb[0].mxu0
    %2257 = vmatprep.mubr.bf16.mxu0 %v1302
    %2258 = vmatmul.mubr.bf16.gmra.mrb[0].mxu0 %v1301
    %v2259 = vpop.f32.mrb[0].mxu0
    %v2260 = vadd.f32 %v2163, %v2259
    %v2261 = vpop.f32.mrb[0].mxu0
    %v2262 = vpop.f32.mrb[0].mxu0
    %v2263 = vadd.f32 %v2166, %v2262
    %v2264 = vpop.f32.mrb[0].mxu0
    %2265 = vmatprep.mubr.bf16.mxu0 %v1308
    %2266 = vmatmul.mubr.bf16.gmra.mrb[0].mxu0 %v1307
    %v2267 = vpop.f32.mrb[0].mxu0
    %v2268 = vadd.f32 %v2171, %v2267
    %v2269 = vpop.f32.mrb[0].mxu0
    %v2270 = vpop.f32.mrb[0].mxu0
    %v2271 = vadd.f32 %v2174, %v2270
    %v2272 = vpop.f32.mrb[0].mxu0
    %2273 = vmatprep.mubr.bf16.mxu0 %v1314
    %2274 = vmatmul.mubr.bf16.gmra.mrb[0].mxu0 %v1313
    %v2275 = vpop.f32.mrb[0].mxu0
    %v2276 = vadd.f32 %v2179, %v2275
    %v2277 = vpop.f32.mrb[0].mxu0
    %v2278 = vpop.f32.mrb[0].mxu0
    %v2279 = vadd.f32 %v2182, %v2278
    %v2280 = vpop.f32.mrb[0].mxu0
    %2281 = vmatprep.mubr.bf16.mxu0 %v1323
    %2282 = vmatmul.mubr.bf16.gmra.mrb[0].mxu0 %v1322
    %v2283 = vpop.f32.mrb[0].mxu0
    %v2284 = vadd.f32 %v2187, %v2283
    %v2285 = vpop.f32.mrb[0].mxu0
    %v2286 = vpop.f32.mrb[0].mxu0
    %v2287 = vadd.f32 %v2190, %v2286
    %v2288 = vpop.f32.mrb[0].mxu0
    %2289 = vmatprep.mubr.bf16.mxu0 %v1329
    %2290 = vmatmul.mubr.bf16.gmra.mrb[0].mxu0 %v1328
    %v2291 = vpop.f32.mrb[0].mxu0
    %v2292 = vadd.f32 %v2195, %v2291
    %v2293 = vpop.f32.mrb[0].mxu0
    %v2294 = vpop.f32.mrb[0].mxu0
    %v2295 = vadd.f32 %v2198, %v2294
    %v2296 = vpop.f32.mrb[0].mxu0
    %2297 = vmatprep.mubr.bf16.mxu0 %v1335
    %2298 = vmatmul.mubr.bf16.gmra.mrb[0].mxu0 %v1334
    %v2299 = vpop.f32.mrb[0].mxu0
    %v2300 = vadd.f32 %v2203, %v2299
    %v2301 = vpop.f32.mrb[0].mxu0
    %v2302 = vpop.f32.mrb[0].mxu0
    %v2303 = vadd.f32 %v2206, %v2302
    %v2304 = vpop.f32.mrb[0].mxu0
    %2305 = vmatprep.mubr.bf16.mxu0 %v1341
    %2306 = vmatmul.mubr.bf16.gmra.mrb[0].mxu0 %v1340
    %v2307 = vpop.f32.mrb[0].mxu0
    %v2308 = vadd.f32 %v2211, %v2307
    %v2309 = vpop.f32.mrb[0].mxu0
    %v2310 = vpop.f32.mrb[0].mxu0
    %v2311 = vadd.f32 %v2214, %v2310
    %v2312 = vpop.f32.mrb[0].mxu0
    %2313 = vdwg.mxu0
    %2314 = vmatprep.subr.bf16.mxu0 0
    %2315 = vmatpush1.bf16.msra.mxu0 %v1846
    %2316 = vmatprep.subr.bf16.mxu0 0
    %2317 = vmatpush1.bf16.msra.mxu0 %v1847
    %2318 = vmatprep.subr.bf16.mxu0 0
    %2319 = vmatpush1.bf16.msra.mxu0 %v1848
    %2320 = vmatprep.subr.bf16.mxu0 0
    %2321 = vmatpush1.bf16.msra.mxu0 %v1849
    %2322 = vmatprep.subr.bf16.mxu0 0
    %2323 = vmatpush1.bf16.msra.mxu0 %v1850
    %2324 = vmatprep.subr.bf16.mxu0 0
    %2325 = vmatpush1.bf16.msra.mxu0 %v1851
    %2326 = vmatprep.subr.bf16.mxu0 0
    %2327 = vmatpush1.bf16.msra.mxu0 %v1852
    %2328 = vmatprep.subr.bf16.mxu0 0
    %2329 = vmatpush1.bf16.msra.mxu0 %v1853
    %2330 = vmatprep.subr.bf16.mxu0 0
    %2331 = vmatpush1.bf16.msra.mxu0 0
    %2332 = vmatprep.subr.bf16.mxu0 0
    %2333 = vmatpush1.bf16.msra.mxu0 0
    %2334 = vmatprep.subr.bf16.mxu0 0
    %2335 = vmatpush1.bf16.msra.mxu0 0
    %2336 = vmatprep.subr.bf16.mxu0 0
    %2337 = vmatpush1.bf16.msra.mxu0 0
    %2338 = vmatprep.subr.bf16.mxu0 0
    %2339 = vmatpush1.bf16.msra.mxu0 0
    %2340 = vmatprep.subr.bf16.mxu0 0
    %2341 = vmatpush1.bf16.msra.mxu0 0
    %2342 = vmatprep.subr.bf16.mxu0 0
    %2343 = vmatpush1.bf16.msra.mxu0 0
    %2344 = vmatprep.subr.bf16.mxu0 0
    %2345 = vmatpush1.bf16.msra.mxu0 0
    %2346 = vmatprep.mubr.bf16.mxu0 0
    %2347 = vmatmul.mubr.bf16.gmra.mrb[0].mxu0 %v1297
    %v2348 = vpop.f32.mrb[0].mxu0
    %v2349 = vadd.f32 %v2252, %v2348
    %v2350 = vpop.f32.mrb[0].mxu0
    %v2351 = vpop.f32.mrb[0].mxu0
    %v2352 = vadd.f32 %v2255, %v2351
    %v2353 = vpop.f32.mrb[0].mxu0
    %2354 = vmatprep.mubr.bf16.mxu0 0
    %2355 = vmatmul.mubr.bf16.gmra.mrb[0].mxu0 %v1303
    %v2356 = vpop.f32.mrb[0].mxu0
    %v2357 = vadd.f32 %v2260, %v2356
    %v2358 = vpop.f32.mrb[0].mxu0
    %v2359 = vpop.f32.mrb[0].mxu0
    %v2360 = vadd.f32 %v2263, %v2359
    %v2361 = vpop.f32.mrb[0].mxu0
    %2362 = vmatprep.mubr.bf16.mxu0 0
    %2363 = vmatmul.mubr.bf16.gmra.mrb[0].mxu0 %v1309
    %v2364 = vpop.f32.mrb[0].mxu0
    %v2365 = vadd.f32 %v2268, %v2364
    %v2366 = vpop.f32.mrb[0].mxu0
    %v2367 = vpop.f32.mrb[0].mxu0
    %v2368 = vadd.f32 %v2271, %v2367
    %v2369 = vpop.f32.mrb[0].mxu0
    %2370 = vmatprep.mubr.bf16.mxu0 0
    %2371 = vmatmul.mubr.bf16.gmra.mrb[0].mxu0 %v1315
    %v2372 = vpop.f32.mrb[0].mxu0
    %v2373 = vadd.f32 %v2276, %v2372
    %v2374 = vpop.f32.mrb[0].mxu0
    %v2375 = vpop.f32.mrb[0].mxu0
    %v2376 = vadd.f32 %v2279, %v2375
    %v2377 = vpop.f32.mrb[0].mxu0
    %2378 = vmatprep.mubr.bf16.mxu0 0
    %2379 = vmatmul.mubr.bf16.gmra.mrb[0].mxu0 %v1324
    %v2380 = vpop.f32.mrb[0].mxu0
    %v2381 = vadd.f32 %v2284, %v2380
    %v2382 = vpop.f32.mrb[0].mxu0
    %v2383 = vpop.f32.mrb[0].mxu0
    %v2384 = vadd.f32 %v2287, %v2383
    %v2385 = vpop.f32.mrb[0].mxu0
    %2386 = vmatprep.mubr.bf16.mxu0 0
    %2387 = vmatmul.mubr.bf16.gmra.mrb[0].mxu0 %v1330
    %v2388 = vpop.f32.mrb[0].mxu0
    %v2389 = vadd.f32 %v2292, %v2388
    %v2390 = vpop.f32.mrb[0].mxu0
    %v2391 = vpop.f32.mrb[0].mxu0
    %v2392 = vadd.f32 %v2295, %v2391
    %v2393 = vpop.f32.mrb[0].mxu0
    %2394 = vmatprep.mubr.bf16.mxu0 0
    %2395 = vmatmul.mubr.bf16.gmra.mrb[0].mxu0 %v1336
    %v2396 = vpop.f32.mrb[0].mxu0
    %v2397 = vadd.f32 %v2300, %v2396
    %v2398 = vpop.f32.mrb[0].mxu0
    %v2399 = vpop.f32.mrb[0].mxu0
    %v2400 = vadd.f32 %v2303, %v2399
    %v2401 = vpop.f32.mrb[0].mxu0
    %2402 = vmatprep.mubr.bf16.mxu0 0
    %2403 = vmatmul.mubr.bf16.gmra.mrb[0].mxu0 %v1342
    %v2404 = vpop.f32.mrb[0].mxu0
    %v2405 = vadd.f32 %v2308, %v2404
    %v2406 = vpop.f32.mrb[0].mxu0
    %v2407 = vpop.f32.mrb[0].mxu0
    %v2408 = vadd.f32 %v2311, %v2407
    %v2409 = vpop.f32.mrb[0].mxu0
    %2410 = vdwg.mxu0
    %v2411 = vpack.c.bf16 %v72, %v71
    %v2412 = vpack.c.bf16 %v74, %v73
    %v2413 = vpack.c.bf16 %v76, %v75
    %v2414 = vpack.c.bf16 %v78, %v77
    %v2415 = vpack.c.bf16 %v123, %v122
    %v2416 = vpack.c.bf16 %v125, %v124
    %v2417 = vpack.c.bf16 %v127, %v126
    %v2418 = vpack.c.bf16 %v129, %v128
    %v2419 = vld [vmem:[%s5] sm:$0x3]
    %v2420 = vld [vmem:[%s6] sm:$0x1]
    %v2422 = vlaneseq
    %v2423 = vshrl.u32 %v2422, 7
    %v2424 = vsub.s32 0, %v2423
    %v2425 = vrot.slane %v2420, %v2424
    %v2428 = vsel %vm719, %v2411, 0
    %v2431 = vsel %vm719, %v2412, 0
    %v2434 = vsel %vm719, %v2413, 0
    %v2437 = vsel %vm719, %v2414, 0
    %v2440 = vsel %vm719, %v2415, 0
    %v2443 = vsel %vm719, %v2416, 0
    %v2446 = vsel %vm719, %v2417, 0
    %v2449 = vsel %vm719, %v2418, 0
    %v2452 = vsel %vm915, %v2419, 0
    %2454 = vmatprep.subr.bf16.mxu0 0
    %2455 = vmatpush1.bf16.msra.mxu0 %v2452
    %2456 = vmatprep.subr.bf16.mxu0 0
    %2457 = vmatpush1.bf16.msra.mxu0 0
    %2458 = vmatprep.subr.bf16.mxu0 0
    %2459 = vmatpush1.bf16.msra.mxu0 0
    %2460 = vmatprep.subr.bf16.mxu0 0
    %2461 = vmatpush1.bf16.msra.mxu0 0
    %2462 = vmatprep.subr.bf16.mxu0 0
    %2463 = vmatpush1.bf16.msra.mxu0 0
    %2464 = vmatprep.subr.bf16.mxu0 0
    %2465 = vmatpush1.bf16.msra.mxu0 0
    %2466 = vmatprep.subr.bf16.mxu0 0
    %2467 = vmatpush1.bf16.msra.mxu0 0
    %2468 = vmatprep.subr.bf16.mxu0 0
    %2469 = vmatpush1.bf16.msra.mxu0 0
    %2470 = vmatprep.subr.bf16.mxu0 0
    %2471 = vmatpush1.bf16.msra.mxu0 0
    %2472 = vmatprep.subr.bf16.mxu0 0
    %2473 = vmatpush1.bf16.msra.mxu0 0
    %2474 = vmatprep.subr.bf16.mxu0 0
    %2475 = vmatpush1.bf16.msra.mxu0 0
    %2476 = vmatprep.subr.bf16.mxu0 0
    %2477 = vmatpush1.bf16.msra.mxu0 0
    %2478 = vmatprep.subr.bf16.mxu0 0
    %2479 = vmatpush1.bf16.msra.mxu0 0
    %2480 = vmatprep.subr.bf16.mxu0 0
    %2481 = vmatpush1.bf16.msra.mxu0 0
    %2482 = vmatprep.subr.bf16.mxu0 0
    %2483 = vmatpush1.bf16.msra.mxu0 0
    %2484 = vmatprep.subr.bf16.mxu0 0
    %2485 = vmatpush1.bf16.msra.mxu0 0
    %2486 = vmatprep.mubr.bf16.mxu0 0
    %2487 = vmatmul.mubr.bf16.gmra.mrb[0].mxu0 %v2428
    %v2488 = vpop.f32.mrb[0].mxu0
    %v2489 = vadd.f32 %v2425, %v2488
    %v2490 = vpop.f32.mrb[0].mxu0
    %v2491 = vpop.f32.mrb[0].mxu0
    %v2492 = vadd.f32 %v2425, %v2491
    %v2493 = vpop.f32.mrb[0].mxu0
    %2494 = vmatprep.mubr.bf16.mxu0 0
    %2495 = vmatmul.mubr.bf16.gmra.mrb[0].mxu0 %v2431
    %v2496 = vpop.f32.mrb[0].mxu0
    %v2497 = vadd.f32 %v2425, %v2496
    %v2498 = vpop.f32.mrb[0].mxu0
    %v2499 = vpop.f32.mrb[0].mxu0
    %v2500 = vadd.f32 %v2425, %v2499
    %v2501 = vpop.f32.mrb[0].mxu0
    %2502 = vmatprep.mubr.bf16.mxu0 0
    %2503 = vmatmul.mubr.bf16.gmra.mrb[0].mxu0 %v2434
    %v2504 = vpop.f32.mrb[0].mxu0
    %v2505 = vadd.f32 %v2425, %v2504
    %v2506 = vpop.f32.mrb[0].mxu0
    %v2507 = vpop.f32.mrb[0].mxu0
    %v2508 = vadd.f32 %v2425, %v2507
    %v2509 = vpop.f32.mrb[0].mxu0
    %2510 = vmatprep.mubr.bf16.mxu0 0
    %2511 = vmatmul.mubr.bf16.gmra.mrb[0].mxu0 %v2437
    %v2512 = vpop.f32.mrb[0].mxu0
    %v2513 = vadd.f32 %v2425, %v2512
    %v2514 = vpop.f32.mrb[0].mxu0
    %v2515 = vpop.f32.mrb[0].mxu0
    %v2516 = vadd.f32 %v2425, %v2515
    %v2517 = vpop.f32.mrb[0].mxu0
    %2518 = vmatprep.mubr.bf16.mxu0 0
    %2519 = vmatmul.mubr.bf16.gmra.mrb[0].mxu0 %v2440
    %v2520 = vpop.f32.mrb[0].mxu0
    %v2521 = vadd.f32 %v2425, %v2520
    %v2522 = vpop.f32.mrb[0].mxu0
    %v2523 = vpop.f32.mrb[0].mxu0
    %v2524 = vadd.f32 %v2425, %v2523
    %v2525 = vpop.f32.mrb[0].mxu0
    %2526 = vmatprep.mubr.bf16.mxu0 0
    %2527 = vmatmul.mubr.bf16.gmra.mrb[0].mxu0 %v2443
    %v2528 = vpop.f32.mrb[0].mxu0
    %v2529 = vadd.f32 %v2425, %v2528
    %v2530 = vpop.f32.mrb[0].mxu0
    %v2531 = vpop.f32.mrb[0].mxu0
    %v2532 = vadd.f32 %v2425, %v2531
    %v2533 = vpop.f32.mrb[0].mxu0
    %2534 = vmatprep.mubr.bf16.mxu0 0
    %2535 = vmatmul.mubr.bf16.gmra.mrb[0].mxu0 %v2446
    %v2536 = vpop.f32.mrb[0].mxu0
    %v2537 = vadd.f32 %v2425, %v2536
    %v2538 = vpop.f32.mrb[0].mxu0
    %v2539 = vpop.f32.mrb[0].mxu0
    %v2540 = vadd.f32 %v2425, %v2539
    %v2541 = vpop.f32.mrb[0].mxu0
    %2542 = vmatprep.mubr.bf16.mxu0 0
    %2543 = vmatmul.mubr.bf16.gmra.mrb[0].mxu0 %v2449
    %v2544 = vpop.f32.mrb[0].mxu0
    %v2545 = vadd.f32 %v2425, %v2544
    %v2546 = vpop.f32.mrb[0].mxu0
    %v2547 = vpop.f32.mrb[0].mxu0
    %v2548 = vadd.f32 %v2425, %v2547
    %v2549 = vpop.f32.mrb[0].mxu0
    %2550 = vdwg.mxu0
    %v2551 = vadd.f32 %v2349, %v2489
    %v2552 = vadd.f32 %v2352, %v2492
    %v2553 = vadd.f32 %v2357, %v2497
    %v2554 = vadd.f32 %v2360, %v2500
    %v2555 = vadd.f32 %v2365, %v2505
    %v2556 = vadd.f32 %v2368, %v2508
    %v2557 = vadd.f32 %v2373, %v2513
    %v2558 = vadd.f32 %v2376, %v2516
    %v2559 = vadd.f32 %v2381, %v2521
    %v2560 = vadd.f32 %v2384, %v2524
    %v2561 = vadd.f32 %v2389, %v2529
    %v2562 = vadd.f32 %v2392, %v2532
    %v2563 = vadd.f32 %v2397, %v2537
    %v2564 = vadd.f32 %v2400, %v2540
    %v2565 = vadd.f32 %v2405, %v2545
    %v2566 = vadd.f32 %v2408, %v2548
    %v2567 = vmax.f32 %v2551, 0.0
    %v2568 = vmax.f32 %v2552, 0.0
    %v2569 = vmax.f32 %v2553, 0.0
    %v2570 = vmax.f32 %v2554, 0.0
    %v2571 = vmax.f32 %v2555, 0.0
    %v2572 = vmax.f32 %v2556, 0.0
    %v2573 = vmax.f32 %v2557, 0.0
    %v2574 = vmax.f32 %v2558, 0.0
    %v2575 = vmax.f32 %v2559, 0.0
    %v2576 = vmax.f32 %v2560, 0.0
    %v2577 = vmax.f32 %v2561, 0.0
    %v2578 = vmax.f32 %v2562, 0.0
    %v2579 = vmax.f32 %v2563, 0.0
    %v2580 = vmax.f32 %v2564, 0.0
    %v2581 = vmax.f32 %v2565, 0.0
    %v2582 = vmax.f32 %v2566, 0.0
    %2583 = vst [vmem:[#allocation2] sm:$0xff] %v2567
    %2584 = vst [vmem:[#allocation2 + $0x8] sm:$0xff] %v2568
    %2585 = vst [vmem:[#allocation2 + $0x10] sm:$0xff] %v2569
    %2586 = vst [vmem:[#allocation2 + $0x18] sm:$0xff] %v2570
    %2587 = vst [vmem:[#allocation2 + $0x20] sm:$0xff] %v2571
    %2588 = vst [vmem:[#allocation2 + $0x28] sm:$0xff] %v2572
    %2589 = vst [vmem:[#allocation2 + $0x30] sm:$0xff] %v2573
    %2590 = vst [vmem:[#allocation2 + $0x38] sm:$0xff] %v2574
    %2591 = vst [vmem:[#allocation2 + $0x40] sm:$0xff] %v2575
    %2592 = vst [vmem:[#allocation2 + $0x48] sm:$0xff] %v2576
    %2593 = vst [vmem:[#allocation2 + $0x50] sm:$0xff] %v2577
    %2594 = vst [vmem:[#allocation2 + $0x58] sm:$0xff] %v2578
    %2595 = vst [vmem:[#allocation2 + $0x60] sm:$0xff] %v2579
    %2596 = vst [vmem:[#allocation2 + $0x68] sm:$0xff] %v2580
    %2597 = vst [vmem:[#allocation2 + $0x70] sm:$0xff] %v2581
    %2598 = vst [vmem:[#allocation2 + $0x78] sm:$0xff] %v2582
    // Predicated region
    $region30: #{tpu_custom_call.1} parent=1 // pred_check
      _
    $region31: #{tpu_custom_call.1} parent=1 // pred_check_branch
      %2600 = sbr.rel (0) target = $region33
    $region32: #{tpu_custom_call.1} parent=1 // pred_region
      %s2602 = ssub.s32 2048, 2048
      %2603 = vsyncadd [#allocation3], %s2602
      %s2604 = sshll.u32 [#allocation2], 4
      %s2605 = int_to_ptr.vmem [resolvable:$true] %s2604
      %2610 = dma.vmem_to_hbm [thread:$0]  %s2605, 2048, %s7, [#allocation3], 128, 128, 8
    $region33: #{tpu_custom_call.1} parent=1 // pred_fallthru
      _
    // Predicated region
    $region34: #{tpu_custom_call.1} parent=1 // pred_check
      _
    $region35: #{tpu_custom_call.1} parent=1 // pred_check_branch
      %2612 = sbr.rel (0) target = $region37
    $region36: #{tpu_custom_call.1} parent=1 // pred_region
      %2613 = dma.done [#allocation3], 2048
    $region37: #{tpu_custom_call.1} parent=1 // pred_fallthru
      _
    %2614 = vsyncpa [#allocation3], 1

</llo_original>
